<compile_context>
chip_gen: v6e
topology: v6e:2x2x1
jax: 0.10.0
libtpu: 0.0.40
codegen_flags: <defaults>
</compile_context>

<pallas_src>
import functools

import jax
import jax.numpy as jnp
from jax.experimental import pallas as pl
from jax.experimental.pallas import tpu as pltpu


# Low-res row/col offsets used by output parity 0 / 1, and the sets of original
# 3x3 taps (kh or kw indices) that fold onto each offset.
_SHIFTS = {0: (-1, 0), 1: (0, 1)}
_TAP_GROUPS = {0: ((0,), (1, 2)), 1: ((0, 1), (2,))}


def _pick_row_tile(n, h, w, c, itemsize, *, target_m=512,
                   max_block_bytes=2 << 20, min_steps=4):
    """Low-res rows per grid step (must divide h).

    Targets: output block within `max_block_bytes` of VMEM, at least
    `min_steps` total grid steps when possible (keeps both v7x TensorCores
    busy at small batch), and matmul M = TH*W >= target_m when possible.
    """
    divisors = [d for d in range(1, h + 1) if h % d == 0]
    out_bytes = lambda t: t * 2 * w * 2 * c * itemsize
    fit = [d for d in divisors if out_bytes(d) <= max_block_bytes] or [1]
    pref = [d for d in fit if n * (h // d) >= min_steps] or fit
    reaching = [d for d in pref if d * w >= target_m]
    return min(reaching) if reaching else max(pref)


def _combined_weights(weight_oihw, dtype):
    """Fold the 3x3 kernel into per-parity stacked weights, shape (2, 2, 4C, C).

    Wc[a, b] is the (4C, C) RHS for output parity (row%2==a, col%2==b); its four
    C-row slabs match the tap order of the kernel's LHS channel concatenation.
    """
    w9 = jnp.transpose(weight_oihw, (2, 3, 1, 0))            # (kh, kw, Cin, Cout)
    rows = []
    for a in (0, 1):
        cols = []
        for b in (0, 1):
            taps = []
            for khs in _TAP_GROUPS[a]:
                for kws in _TAP_GROUPS[b]:
                    m = sum(w9[kh, kw] for kh in khs for kw in kws)  # (Cin, Cout)
                    taps.append(m)
            cols.append(jnp.concatenate(taps, axis=0))       # (4C, C)
        rows.append(jnp.stack(cols, axis=0))                 # (2, 4C, C)
    return jnp.stack(rows, axis=0).astype(dtype)             # (2, 2, 4C, C)


# ----------------------------------------------------------------------------
# Fused nearest-x2 upsample + 3x3 "same" conv kernel.
# ----------------------------------------------------------------------------
def _fused_upconv_kernel(x_ref, wc_ref, b_ref, o_ref, xt_ref, *, TH, W, C):
    # x_ref : (H, W, C)       full low-res image of current batch element (VMEM)
    # wc_ref: (2, 2, 4C, C)   folded weights per output parity
    # b_ref : (1, C)          bias (f32)
    # o_ref : (TH, 2, W, 2C)  o[h, a, w, b*C+c] = y[2*(hi0+h)+a, 2*w+b, c]
    # xt_ref: (TH+2, W+2, C)  zero-padded input tile (1-row/col halo)
    r = pl.program_id(1)
    last = pl.num_programs(1) - 1
    hi0 = pl.multiple_of(r * TH, TH)
    dt = x_ref.dtype

    # Halo build: zero only the border (2 columns always; top/bottom halo row
    # only at the image boundary) -- the interior is fully overwritten, so a
    # full-tile zero fill would be pure wasted vst traffic.
    xt_ref[:, 0, :] = jnp.zeros((TH + 2, C), dt)
    xt_ref[:, W + 1, :] = jnp.zeros((TH + 2, C), dt)
    xt_ref[1:TH + 1, 1:W + 1, :] = x_ref[pl.ds(hi0, TH), :, :]

    @pl.when(r == 0)
    def _():
        xt_ref[0, 1:W + 1, :] = jnp.zeros((W, C), dt)

    @pl.when(r > 0)
    def _():
        xt_ref[0, 1:W + 1, :] = x_ref[hi0 - 1, :, :]

    @pl.when(r == last)
    def _():
        xt_ref[TH + 1, 1:W + 1, :] = jnp.zeros((W, C), dt)

    @pl.when(r < last)
    def _():
        xt_ref[TH + 1, 1:W + 1, :] = x_ref[hi0 + TH, :, :]

    # Load each of the 9 distinct shifted slabs once; reuse across parities.
    slab = {(dr, dc): xt_ref[1 + dr:1 + dr + TH, 1 + dc:1 + dc + W, :]
            for dr in (-1, 0, 1) for dc in (-1, 0, 1)}

    bias = b_ref[...]                                         # (1, C) f32, hoisted
    for a in (0, 1):                                          # output row parity
        for b in (0, 1):                                      # output col parity
            # One (TH*W, 4C) x (4C, C) matmul per output parity, f32 accumulate.
            lhs = jnp.concatenate(
                [slab[(dr, dc)] for dr in _SHIFTS[a] for dc in _SHIFTS[b]],
                axis=-1).reshape(TH * W, 4 * C)
            acc = jnp.dot(lhs, wc_ref[a, b],
                          preferred_element_type=jnp.float32) + bias
            o_ref[:, a, :, b * C:(b + 1) * C] = (
                acc.reshape(TH, W, C).astype(o_ref.dtype))


def fused_upsample2x_conv3x3(x_nhwc, weight_oihw, bias_c):
    N, H, W, C = x_nhwc.shape
    itemsize = jnp.dtype(x_nhwc.dtype).itemsize
    TH = _pick_row_tile(N, H, W, C, itemsize)
    wc = _combined_weights(weight_oihw, x_nhwc.dtype)         # (2, 2, 4C, C)
    b1 = bias_c.reshape(1, C).astype(jnp.float32)

    kernel = functools.partial(_fused_upconv_kernel, TH=TH, W=W, C=C)

    # VMEM budget: pipeline double-buffers each input/output block.
    img_b = H * W * C * itemsize
    out_blk_b = TH * 2 * W * 2 * C * itemsize
    xt_b = (TH + 2) * (W + 2) * C * itemsize
    wc_b = 2 * 2 * 4 * C * C * itemsize
    need = 2 * (img_b + out_blk_b + wc_b) + xt_b + (1 << 20)
    vmem_limit = int(min(100 << 20, max(32 << 20, 2 * need)))

    cost = pl.CostEstimate(
        flops=int(32 * N * H * W * C * C),
        transcendentals=0,
        bytes_accessed=int((5 * N * H * W * C + 16 * C * C + C) * itemsize),
    )
    out5 = pl.pallas_call(
        kernel,
        out_shape=jax.ShapeDtypeStruct((N, H, 2, W, 2 * C), x_nhwc.dtype),
        grid=(N, H // TH),
        in_specs=[
            pl.BlockSpec((None, H, W, C), lambda n, r: (n, 0, 0, 0)),
            pl.BlockSpec((2, 2, 4 * C, C), lambda n, r: (0, 0, 0, 0)),
            pl.BlockSpec((1, C), lambda n, r: (0, 0)),
        ],
        out_specs=pl.BlockSpec((None, TH, 2, W, 2 * C),
                               lambda n, r: (n, r, 0, 0, 0)),
        scratch_shapes=[pltpu.VMEM((TH + 2, W + 2, C), x_nhwc.dtype)],
        compiler_params=pltpu.CompilerParams(
            dimension_semantics=("parallel", "parallel"),
            vmem_limit_bytes=vmem_limit),
        cost_estimate=cost,
    )(x_nhwc, wc, b1)
    # (N, H, 2, W, 2C) -> (N, 2H, 2W, C): pure contiguous reshape, no transpose.
    return out5.reshape(N, 2 * H, 2 * W, C)


# ----------------------------------------------------------------------------
# Standalone nearest-x2 upsample (use_conv=False path): interleaved output is
# produced directly via the same parity packing (no replicate/transpose glue).
# ----------------------------------------------------------------------------
def _upsample2x_kernel(x_ref, o_ref):
    row = x_ref[...]                                          # (TH, W, C)
    rep = jnp.concatenate([row, row], axis=-1)                # (TH, W, 2C)
    o_ref[:, 0] = rep
    o_ref[:, 1] = rep


def nearest_upsample_2x(x_nhwc):
    N, H, W, C = x_nhwc.shape
    itemsize = jnp.dtype(x_nhwc.dtype).itemsize
    # Pure HBM-bandwidth kernel: biggest block within budget, >= 4 grid steps.
    TH = _pick_row_tile(N, H, W, C, itemsize, target_m=1 << 30,
                        max_block_bytes=8 << 20)
    blk_b = TH * W * C * itemsize
    vmem_limit = int(min(100 << 20, max(32 << 20, 8 * blk_b + (1 << 20))))
    out5 = pl.pallas_call(
        _upsample2x_kernel,
        out_shape=jax.ShapeDtypeStruct((N, H, 2, W, 2 * C), x_nhwc.dtype),
        grid=(N, H // TH),
        in_specs=[pl.BlockSpec((None, TH, W, C), lambda n, r: (n, r, 0, 0))],
        out_specs=pl.BlockSpec((None, TH, 2, W, 2 * C),
                               lambda n, r: (n, r, 0, 0, 0)),
        compiler_params=pltpu.CompilerParams(
            dimension_semantics=("parallel", "parallel"),
            vmem_limit_bytes=vmem_limit),
    )(x_nhwc)
    return out5.reshape(N, 2 * H, 2 * W, C)


# ----------------------------------------------------------------------------
# Upsample.forward equivalent (dims=2 path).
# ----------------------------------------------------------------------------
def upsample_forward(x_nchw, weight_oihw=None, bias=None, *, channels,
                     use_conv=True):
    assert x_nchw.shape[1] == channels
    x = jnp.transpose(x_nchw, (0, 2, 3, 1))                   # NCHW -> NHWC
    if use_conv:
        y = fused_upsample2x_conv3x3(x, weight_oihw, bias)
    else:
        y = nearest_upsample_2x(x)
    return jnp.transpose(y, (0, 3, 1, 2))                     # NHWC -> NCHW


def reference_forward(x_nchw, weight_oihw, bias, use_conv=True):
    x = jnp.repeat(jnp.repeat(x_nchw, 2, axis=2), 2, axis=3)
    if use_conv:
        x = jax.lax.conv_general_dilated(
            x, weight_oihw, window_strides=(1, 1), padding=((1, 1), (1, 1)),
            dimension_numbers=("NCHW", "OIHW", "NCHW"))
        x = x + bias.reshape(1, -1, 1, 1)
    return x


if __name__ == "__main__":
    key = jax.random.PRNGKey(0)
    kx, kw, kb = jax.random.split(key, 3)

    # Module config: channels=4, use_conv=True, seq_factor=None, dims=2
    N, C, H, W = 2, 4, 16, 16
    x = jax.random.normal(kx, (N, C, H, W), dtype=jnp.float32)
    weight = jax.random.normal(kw, (C, C, 3, 3), dtype=jnp.float32) * 0.1
    bias = jax.random.normal(kb, (C,), dtype=jnp.float32) * 0.1

    # f32, use_conv=True (tile picker gives TH=8 -> halo-exchange path runs).
    out = upsample_forward(x, weight, bias, channels=C, use_conv=True)
    out = jax.block_until_ready(out)
    assert out.shape == (N, C, 2 * H, 2 * W)
    ref = reference_forward(x, weight, bias, use_conv=True)
    assert jnp.allclose(out, ref, atol=1e-4, rtol=1e-4), \
        float(jnp.max(jnp.abs(out - ref)))

    # use_conv=False path.
    out_nc = upsample_forward(x, channels=C, use_conv=False)
    out_nc = jax.block_until_ready(out_nc)
    ref_nc = reference_forward(x, weight, bias, use_conv=False)
    assert jnp.allclose(out_nc, ref_nc)

    # bf16 activations (bf16 MXU path); folded weights are summed in f32 then
    # cast, so compare against the f32 reference with a loose tolerance.
    out_bf = upsample_forward(x.astype(jnp.bfloat16), weight, bias,
                              channels=C, use_conv=True)
    out_bf = jax.block_until_ready(out_bf)
    err_bf = float(jnp.max(jnp.abs(out_bf.astype(jnp.float32) - ref)))
    assert jnp.allclose(out_bf.astype(jnp.float32), ref,
                        atol=2e-1, rtol=5e-2), err_bf

    # Odd spatial shape: exercises the tile picker + halo at both boundaries.
    N2, H2, W2 = 1, 10, 8
    x2 = jax.random.normal(kx, (N2, C, H2, W2), dtype=jnp.float32)
    out2 = upsample_forward(x2, weight, bias, channels=C, use_conv=True)
    out2 = jax.block_until_ready(out2)
    ref2 = reference_forward(x2, weight, bias, use_conv=True)
    assert jnp.allclose(out2, ref2, atol=1e-4, rtol=1e-4), \
        float(jnp.max(jnp.abs(out2 - ref2)))

    print("KERNEL_OK")
</pallas_src>

<mosaic_0001>
module attributes {stable_mosaic.version = 11 : i64} {
  func.func @_fused_upconv_kernel(%arg0: i32, %arg1: i32, %arg2: memref<1x16x16x4xf32, #tpu.memory_space<vmem>>, %arg3: memref<2x2x16x4xf32, #tpu.memory_space<vmem>>, %arg4: memref<1x4xf32, #tpu.memory_space<vmem>>, %arg5: memref<1x8x2x16x8xf32, #tpu.memory_space<vmem>>, %arg6: memref<10x18x4xf32, #tpu.memory_space<vmem>>) attributes {dimension_semantics = [#tpu.dimension_semantics<parallel>, #tpu.dimension_semantics<parallel>], iteration_bounds = array<i64: 2, 2>, scalar_prefetch = 0 : i64, scratch_operands = 1 : i64, tpu.core_type = #tpu.core_type<tc>, window_params = [{transform_indices = @transform_0, window_bounds = array<i64: 1, 16, 16, 4>}, {pipeline_mode = #tpu.pipeline_mode<synchronous>, transform_indices = @transform_1, window_bounds = array<i64: 2, 2, 16, 4>}, {pipeline_mode = #tpu.pipeline_mode<synchronous>, transform_indices = @transform_2, window_bounds = array<i64: 1, 4>}, {transform_indices = @transform_3, window_bounds = array<i64: 1, 8, 2, 16, 8>}]} {
    %c8_i32 = arith.constant 8 : i32
    %0 = arith.muli %arg1, %c8_i32 : i32
    %1 = tpu.assume_multiple %0, 8 : i32
    %cst = arith.constant 0.000000e+00 : f32
    %2 = vector.broadcast %cst : f32 to vector<10x4xf32>
    %c0 = arith.constant 0 : index
    %c0_0 = arith.constant 0 : index
    %c0_1 = arith.constant 0 : index
    %3 = vector.load %arg6[%c0, %c0_0, %c0_1] : memref<10x18x4xf32, #tpu.memory_space<vmem>>, vector<10x1x4xf32>
    %4 = vector.shape_cast %3 : vector<10x1x4xf32> to vector<10x4xf32>
    %5 = vector.shape_cast %2 : vector<10x4xf32> to vector<10x1x4xf32>
    tpu.vector_store %arg6[%c0, %c0_0, %c0_1], %5 {strides = array<i32>} : memref<10x18x4xf32, #tpu.memory_space<vmem>>, vector<10x1x4xf32>,
    %cst_2 = arith.constant 0.000000e+00 : f32
    %6 = vector.broadcast %cst_2 : f32 to vector<10x4xf32>
    %c0_3 = arith.constant 0 : index
    %c17 = arith.constant 17 : index
    %c0_4 = arith.constant 0 : index
    %7 = vector.load %arg6[%c0_3, %c17, %c0_4] : memref<10x18x4xf32, #tpu.memory_space<vmem>>, vector<10x1x4xf32>
    %8 = vector.shape_cast %7 : vector<10x1x4xf32> to vector<10x4xf32>
    %9 = vector.shape_cast %6 : vector<10x4xf32> to vector<10x1x4xf32>
    tpu.vector_store %arg6[%c0_3, %c17, %c0_4], %9 {strides = array<i32>} : memref<10x18x4xf32, #tpu.memory_space<vmem>>, vector<10x1x4xf32>,
    %c0_5 = arith.constant 0 : index
    %10 = arith.index_cast %1 : i32 to index
    %c0_6 = arith.constant 0 : index
    %c0_7 = arith.constant 0 : index
    %11 = vector.load %arg2[%c0_5, %10, %c0_6, %c0_7] : memref<1x16x16x4xf32, #tpu.memory_space<vmem>>, vector<1x8x16x4xf32>
    %12 = vector.shape_cast %11 : vector<1x8x16x4xf32> to vector<8x16x4xf32>
    %c1 = arith.constant 1 : index
    %c1_8 = arith.constant 1 : index
    %c0_9 = arith.constant 0 : index
    %13 = vector.load %arg6[%c1, %c1_8, %c0_9] : memref<10x18x4xf32, #tpu.memory_space<vmem>>, vector<8x16x4xf32>
    tpu.vector_store %arg6[%c1, %c1_8, %c0_9], %12 {strides = array<i32>} : memref<10x18x4xf32, #tpu.memory_space<vmem>>, vector<8x16x4xf32>,
    %c0_i32 = arith.constant 0 : i32
    %14 = arith.cmpi eq, %arg1, %c0_i32 : i32
    %15 = arith.extui %14 : i1 to i32
    %c0_i32_10 = arith.constant 0 : i32
    %16 = arith.cmpi ne, %15, %c0_i32_10 : i32
    scf.if %16 {
      %cst_83 = arith.constant 0.000000e+00 : f32
      %80 = vector.broadcast %cst_83 : f32 to vector<16x4xf32>
      %c0_84 = arith.constant 0 : index
      %c1_85 = arith.constant 1 : index
      %c0_86 = arith.constant 0 : index
      %81 = vector.load %arg6[%c0_84, %c1_85, %c0_86] : memref<10x18x4xf32, #tpu.memory_space<vmem>>, vector<1x16x4xf32>
      %82 = vector.shape_cast %81 : vector<1x16x4xf32> to vector<16x4xf32>
      %83 = vector.shape_cast %80 : vector<16x4xf32> to vector<1x16x4xf32>
      tpu.vector_store %arg6[%c0_84, %c1_85, %c0_86], %83 {strides = array<i32>} : memref<10x18x4xf32, #tpu.memory_space<vmem>>, vector<1x16x4xf32>,
    } else {
    }
    %c0_i32_11 = arith.constant 0 : i32
    %17 = arith.cmpi sgt, %arg1, %c0_i32_11 : i32
    %18 = arith.extui %17 : i1 to i32
    %c0_i32_12 = arith.constant 0 : i32
    %19 = arith.cmpi ne, %18, %c0_i32_12 : i32
    scf.if %19 {
      %c1_i32_83 = arith.constant 1 : i32
      %80 = arith.subi %1, %c1_i32_83 : i32
      %c0_84 = arith.constant 0 : index
      %81 = arith.index_cast %80 : i32 to index
      %c0_85 = arith.constant 0 : index
      %c0_86 = arith.constant 0 : index
      %82 = vector.load %arg2[%c0_84, %81, %c0_85, %c0_86] : memref<1x16x16x4xf32, #tpu.memory_space<vmem>>, vector<1x1x16x4xf32>
      %83 = vector.shape_cast %82 : vector<1x1x16x4xf32> to vector<16x4xf32>
      %c0_87 = arith.constant 0 : index
      %c1_88 = arith.constant 1 : index
      %c0_89 = arith.constant 0 : index
      %84 = vector.load %arg6[%c0_87, %c1_88, %c0_89] : memref<10x18x4xf32, #tpu.memory_space<vmem>>, vector<1x16x4xf32>
      %85 = vector.shape_cast %84 : vector<1x16x4xf32> to vector<16x4xf32>
      %86 = vector.shape_cast %83 : vector<16x4xf32> to vector<1x16x4xf32>
      tpu.vector_store %arg6[%c0_87, %c1_88, %c0_89], %86 {strides = array<i32>} : memref<10x18x4xf32, #tpu.memory_space<vmem>>, vector<1x16x4xf32>,
    } else {
    }
    %c1_i32 = arith.constant 1 : i32
    %20 = arith.cmpi eq, %arg1, %c1_i32 : i32
    %21 = arith.extui %20 : i1 to i32
    %c0_i32_13 = arith.constant 0 : i32
    %22 = arith.cmpi ne, %21, %c0_i32_13 : i32
    scf.if %22 {
      %cst_83 = arith.constant 0.000000e+00 : f32
      %80 = vector.broadcast %cst_83 : f32 to vector<16x4xf32>
      %c9 = arith.constant 9 : index
      %c1_84 = arith.constant 1 : index
      %c0_85 = arith.constant 0 : index
      %81 = vector.load %arg6[%c9, %c1_84, %c0_85] : memref<10x18x4xf32, #tpu.memory_space<vmem>>, vector<1x16x4xf32>
      %82 = vector.shape_cast %81 : vector<1x16x4xf32> to vector<16x4xf32>
      %83 = vector.shape_cast %80 : vector<16x4xf32> to vector<1x16x4xf32>
      tpu.vector_store %arg6[%c9, %c1_84, %c0_85], %83 {strides = array<i32>} : memref<10x18x4xf32, #tpu.memory_space<vmem>>, vector<1x16x4xf32>,
    } else {
    }
    %c1_i32_14 = arith.constant 1 : i32
    %23 = arith.cmpi slt, %arg1, %c1_i32_14 : i32
    %24 = arith.extui %23 : i1 to i32
    %c0_i32_15 = arith.constant 0 : i32
    %25 = arith.cmpi ne, %24, %c0_i32_15 : i32
    scf.if %25 {
      %c8_i32_83 = arith.constant 8 : i32
      %80 = arith.addi %1, %c8_i32_83 : i32
      %c0_84 = arith.constant 0 : index
      %81 = arith.index_cast %80 : i32 to index
      %c0_85 = arith.constant 0 : index
      %c0_86 = arith.constant 0 : index
      %82 = vector.load %arg2[%c0_84, %81, %c0_85, %c0_86] : memref<1x16x16x4xf32, #tpu.memory_space<vmem>>, vector<1x1x16x4xf32>
      %83 = vector.shape_cast %82 : vector<1x1x16x4xf32> to vector<16x4xf32>
      %c9 = arith.constant 9 : index
      %c1_87 = arith.constant 1 : index
      %c0_88 = arith.constant 0 : index
      %84 = vector.load %arg6[%c9, %c1_87, %c0_88] : memref<10x18x4xf32, #tpu.memory_space<vmem>>, vector<1x16x4xf32>
      %85 = vector.shape_cast %84 : vector<1x16x4xf32> to vector<16x4xf32>
      %86 = vector.shape_cast %83 : vector<16x4xf32> to vector<1x16x4xf32>
      tpu.vector_store %arg6[%c9, %c1_87, %c0_88], %86 {strides = array<i32>} : memref<10x18x4xf32, #tpu.memory_space<vmem>>, vector<1x16x4xf32>,
    } else {
    }
    %c0_16 = arith.constant 0 : index
    %c0_17 = arith.constant 0 : index
    %c0_18 = arith.constant 0 : index
    %26 = vector.load %arg6[%c0_16, %c0_17, %c0_18] : memref<10x18x4xf32, #tpu.memory_space<vmem>>, vector<8x16x4xf32>
    %c0_19 = arith.constant 0 : index
    %c1_20 = arith.constant 1 : index
    %c0_21 = arith.constant 0 : index
    %27 = vector.load %arg6[%c0_19, %c1_20, %c0_21] : memref<10x18x4xf32, #tpu.memory_space<vmem>>, vector<8x16x4xf32>
    %c0_22 = arith.constant 0 : index
    %c2 = arith.constant 2 : index
    %c0_23 = arith.constant 0 : index
    %28 = vector.load %arg6[%c0_22, %c2, %c0_23] : memref<10x18x4xf32, #tpu.memory_space<vmem>>, vector<8x16x4xf32>
    %c1_24 = arith.constant 1 : index
    %c0_25 = arith.constant 0 : index
    %c0_26 = arith.constant 0 : index
    %29 = vector.load %arg6[%c1_24, %c0_25, %c0_26] : memref<10x18x4xf32, #tpu.memory_space<vmem>>, vector<8x16x4xf32>
    %c1_27 = arith.constant 1 : index
    %c1_28 = arith.constant 1 : index
    %c0_29 = arith.constant 0 : index
    %30 = vector.load %arg6[%c1_27, %c1_28, %c0_29] : memref<10x18x4xf32, #tpu.memory_space<vmem>>, vector<8x16x4xf32>
    %c1_30 = arith.constant 1 : index
    %c2_31 = arith.constant 2 : index
    %c0_32 = arith.constant 0 : index
    %31 = vector.load %arg6[%c1_30, %c2_31, %c0_32] : memref<10x18x4xf32, #tpu.memory_space<vmem>>, vector<8x16x4xf32>
    %c2_33 = arith.constant 2 : index
    %c0_34 = arith.constant 0 : index
    %c0_35 = arith.constant 0 : index
    %32 = vector.load %arg6[%c2_33, %c0_34, %c0_35] : memref<10x18x4xf32, #tpu.memory_space<vmem>>, vector<8x16x4xf32>
    %c2_36 = arith.constant 2 : index
    %c1_37 = arith.constant 1 : index
    %c0_38 = arith.constant 0 : index
    %33 = vector.load %arg6[%c2_36, %c1_37, %c0_38] : memref<10x18x4xf32, #tpu.memory_space<vmem>>, vector<8x16x4xf32>
    %c2_39 = arith.constant 2 : index
    %c2_40 = arith.constant 2 : index
    %c0_41 = arith.constant 0 : index
    %34 = vector.load %arg6[%c2_39, %c2_40, %c0_41] : memref<10x18x4xf32, #tpu.memory_space<vmem>>, vector<8x16x4xf32>
    %c0_42 = arith.constant 0 : index
    %c0_43 = arith.constant 0 : index
    %35 = vector.load %arg4[%c0_42, %c0_43] : memref<1x4xf32, #tpu.memory_space<vmem>>, vector<1x4xf32>
    %36 = tpu.concatenate %26, %27, %29, %30 in 2 : vector<8x16x4xf32>, vector<8x16x4xf32>, vector<8x16x4xf32>, vector<8x16x4xf32> -> vector<8x16x16xf32>
    %37 = vector.shape_cast %36 : vector<8x16x16xf32> to vector<128x16xf32>
    %c0_44 = arith.constant 0 : index
    %c0_45 = arith.constant 0 : index
    %c0_46 = arith.constant 0 : index
    %c0_47 = arith.constant 0 : index
    %38 = vector.load %arg3[%c0_44, %c0_45, %c0_46, %c0_47] : memref<2x2x16x4xf32, #tpu.memory_space<vmem>>, vector<1x1x16x4xf32>
    %39 = vector.shape_cast %38 : vector<1x1x16x4xf32> to vector<16x4xf32>
    %cst_48 = arith.constant dense<0.000000e+00> : vector<128x4xf32>
    %40 = tpu.matmul %37, %39, %cst_48 {dimension_numbers = #tpu.dot_dimension_numbers<[1], [0], [0], [1], [0, 0, 1, 1], [], []>} : vector<128x16xf32>, vector<16x4xf32>, vector<128x4xf32> -> vector<128x4xf32>
    %41 = vector.broadcast %35 : vector<1x4xf32> to vector<128x4xf32>
    %42 = arith.addf %40, %41 : vector<128x4xf32>
    %43 = vector.shape_cast %42 : vector<128x4xf32> to vector<8x16x4xf32>
    %c0_49 = arith.constant 0 : index
    %c0_50 = arith.constant 0 : index
    %c0_51 = arith.constant 0 : index
    %c0_52 = arith.constant 0 : index
    %c0_53 = arith.constant 0 : index
    %44 = vector.load %arg5[%c0_49, %c0_50, %c0_51, %c0_52, %c0_53] : memref<1x8x2x16x8xf32, #tpu.memory_space<vmem>>, vector<1x8x1x16x4xf32>
    %45 = vector.shape_cast %44 : vector<1x8x1x16x4xf32> to vector<8x16x4xf32>
    %46 = vector.shape_cast %43 : vector<8x16x4xf32> to vector<1x8x1x16x4xf32>
    tpu.vector_store %arg5[%c0_49, %c0_50, %c0_51, %c0_52, %c0_53], %46 {strides = array<i32>} : memref<1x8x2x16x8xf32, #tpu.memory_space<vmem>>, vector<1x8x1x16x4xf32>,
    %47 = tpu.concatenate %27, %28, %30, %31 in 2 : vector<8x16x4xf32>, vector<8x16x4xf32>, vector<8x16x4xf32>, vector<8x16x4xf32> -> vector<8x16x16xf32>
    %48 = vector.shape_cast %47 : vector<8x16x16xf32> to vector<128x16xf32>
    %c0_54 = arith.constant 0 : index
    %c1_55 = arith.constant 1 : index
    %c0_56 = arith.constant 0 : index
    %c0_57 = arith.constant 0 : index
    %49 = vector.load %arg3[%c0_54, %c1_55, %c0_56, %c0_57] : memref<2x2x16x4xf32, #tpu.memory_space<vmem>>, vector<1x1x16x4xf32>
    %50 = vector.shape_cast %49 : vector<1x1x16x4xf32> to vector<16x4xf32>
    %cst_58 = arith.constant dense<0.000000e+00> : vector<128x4xf32>
    %51 = tpu.matmul %48, %50, %cst_58 {dimension_numbers = #tpu.dot_dimension_numbers<[1], [0], [0], [1], [0, 0, 1, 1], [], []>} : vector<128x16xf32>, vector<16x4xf32>, vector<128x4xf32> -> vector<128x4xf32>
    %52 = vector.broadcast %35 : vector<1x4xf32> to vector<128x4xf32>
    %53 = arith.addf %51, %52 : vector<128x4xf32>
    %54 = vector.shape_cast %53 : vector<128x4xf32> to vector<8x16x4xf32>
    %c0_59 = arith.constant 0 : index
    %c0_60 = arith.constant 0 : index
    %c0_61 = arith.constant 0 : index
    %c0_62 = arith.constant 0 : index
    %c4 = arith.constant 4 : index
    %55 = vector.load %arg5[%c0_59, %c0_60, %c0_61, %c0_62, %c4] : memref<1x8x2x16x8xf32, #tpu.memory_space<vmem>>, vector<1x8x1x16x4xf32>
    %56 = vector.shape_cast %55 : vector<1x8x1x16x4xf32> to vector<8x16x4xf32>
    %57 = vector.shape_cast %54 : vector<8x16x4xf32> to vector<1x8x1x16x4xf32>
    tpu.vector_store %arg5[%c0_59, %c0_60, %c0_61, %c0_62, %c4], %57 {strides = array<i32>} : memref<1x8x2x16x8xf32, #tpu.memory_space<vmem>>, vector<1x8x1x16x4xf32>,
    %58 = tpu.concatenate %29, %30, %32, %33 in 2 : vector<8x16x4xf32>, vector<8x16x4xf32>, vector<8x16x4xf32>, vector<8x16x4xf32> -> vector<8x16x16xf32>
    %59 = vector.shape_cast %58 : vector<8x16x16xf32> to vector<128x16xf32>
    %c1_63 = arith.constant 1 : index
    %c0_64 = arith.constant 0 : index
    %c0_65 = arith.constant 0 : index
    %c0_66 = arith.constant 0 : index
    %60 = vector.load %arg3[%c1_63, %c0_64, %c0_65, %c0_66] : memref<2x2x16x4xf32, #tpu.memory_space<vmem>>, vector<1x1x16x4xf32>
    %61 = vector.shape_cast %60 : vector<1x1x16x4xf32> to vector<16x4xf32>
    %cst_67 = arith.constant dense<0.000000e+00> : vector<128x4xf32>
    %62 = tpu.matmul %59, %61, %cst_67 {dimension_numbers = #tpu.dot_dimension_numbers<[1], [0], [0], [1], [0, 0, 1, 1], [], []>} : vector<128x16xf32>, vector<16x4xf32>, vector<128x4xf32> -> vector<128x4xf32>
    %63 = vector.broadcast %35 : vector<1x4xf32> to vector<128x4xf32>
    %64 = arith.addf %62, %63 : vector<128x4xf32>
    %65 = vector.shape_cast %64 : vector<128x4xf32> to vector<8x16x4xf32>
    %c0_68 = arith.constant 0 : index
    %c0_69 = arith.constant 0 : index
    %c1_70 = arith.constant 1 : index
    %c0_71 = arith.constant 0 : index
    %c0_72 = arith.constant 0 : index
    %66 = vector.load %arg5[%c0_68, %c0_69, %c1_70, %c0_71, %c0_72] : memref<1x8x2x16x8xf32, #tpu.memory_space<vmem>>, vector<1x8x1x16x4xf32>
    %67 = vector.shape_cast %66 : vector<1x8x1x16x4xf32> to vector<8x16x4xf32>
    %68 = vector.shape_cast %65 : vector<8x16x4xf32> to vector<1x8x1x16x4xf32>
    tpu.vector_store %arg5[%c0_68, %c0_69, %c1_70, %c0_71, %c0_72], %68 {strides = array<i32>} : memref<1x8x2x16x8xf32, #tpu.memory_space<vmem>>, vector<1x8x1x16x4xf32>,
    %69 = tpu.concatenate %30, %31, %33, %34 in 2 : vector<8x16x4xf32>, vector<8x16x4xf32>, vector<8x16x4xf32>, vector<8x16x4xf32> -> vector<8x16x16xf32>
    %70 = vector.shape_cast %69 : vector<8x16x16xf32> to vector<128x16xf32>
    %c1_73 = arith.constant 1 : index
    %c1_74 = arith.constant 1 : index
    %c0_75 = arith.constant 0 : index
    %c0_76 = arith.constant 0 : index
    %71 = vector.load %arg3[%c1_73, %c1_74, %c0_75, %c0_76] : memref<2x2x16x4xf32, #tpu.memory_space<vmem>>, vector<1x1x16x4xf32>
    %72 = vector.shape_cast %71 : vector<1x1x16x4xf32> to vector<16x4xf32>
    %cst_77 = arith.constant dense<0.000000e+00> : vector<128x4xf32>
    %73 = tpu.matmul %70, %72, %cst_77 {dimension_numbers = #tpu.dot_dimension_numbers<[1], [0], [0], [1], [0, 0, 1, 1], [], []>} : vector<128x16xf32>, vector<16x4xf32>, vector<128x4xf32> -> vector<128x4xf32>
    %74 = vector.broadcast %35 : vector<1x4xf32> to vector<128x4xf32>
    %75 = arith.addf %73, %74 : vector<128x4xf32>
    %76 = vector.shape_cast %75 : vector<128x4xf32> to vector<8x16x4xf32>
    %c0_78 = arith.constant 0 : index
    %c0_79 = arith.constant 0 : index
    %c1_80 = arith.constant 1 : index
    %c0_81 = arith.constant 0 : index
    %c4_82 = arith.constant 4 : index
    %77 = vector.load %arg5[%c0_78, %c0_79, %c1_80, %c0_81, %c4_82] : memref<1x8x2x16x8xf32, #tpu.memory_space<vmem>>, vector<1x8x1x16x4xf32>
    %78 = vector.shape_cast %77 : vector<1x8x1x16x4xf32> to vector<8x16x4xf32>
    %79 = vector.shape_cast %76 : vector<8x16x4xf32> to vector<1x8x1x16x4xf32>
    tpu.vector_store %arg5[%c0_78, %c0_79, %c1_80, %c0_81, %c4_82], %79 {strides = array<i32>} : memref<1x8x2x16x8xf32, #tpu.memory_space<vmem>>, vector<1x8x1x16x4xf32>,
    return
  }
  func.func @transform_0(%arg0: i32, %arg1: i32) -> (i32, i32, i32, i32) {
    %c0_i32 = arith.constant 0 : i32
    %c0_i32_0 = arith.constant 0 : i32
    %c0_i32_1 = arith.constant 0 : i32
    %c0_i32_2 = arith.constant 0 : i32
    return %arg0, %c0_i32, %c0_i32_0, %c0_i32_1 : i32, i32, i32, i32
  }
  func.func @transform_1(%arg0: i32, %arg1: i32) -> (i32, i32, i32, i32) {
    %c0_i32 = arith.constant 0 : i32
    %c0_i32_0 = arith.constant 0 : i32
    %c0_i32_1 = arith.constant 0 : i32
    %c0_i32_2 = arith.constant 0 : i32
    %c0_i32_3 = arith.constant 0 : i32
    return %c0_i32, %c0_i32_0, %c0_i32_1, %c0_i32_2 : i32, i32, i32, i32
  }
  func.func @transform_2(%arg0: i32, %arg1: i32) -> (i32, i32) {
    %c0_i32 = arith.constant 0 : i32
    %c0_i32_0 = arith.constant 0 : i32
    %c0_i32_1 = arith.constant 0 : i32
    return %c0_i32, %c0_i32_0 : i32, i32
  }
  func.func @transform_3(%arg0: i32, %arg1: i32) -> (i32, i32, i32, i32, i32) {
    %c0_i32 = arith.constant 0 : i32
    %c0_i32_0 = arith.constant 0 : i32
    %c0_i32_1 = arith.constant 0 : i32
    %c0_i32_2 = arith.constant 0 : i32
    return %arg0, %arg1, %c0_i32, %c0_i32_0, %c0_i32_1 : i32, i32, i32, i32, i32
  }
}

</mosaic_0001>

<llo_original>
// kernel: tpu_custom_call.1
$region0: #{tpu_custom_call.1}
  #allocation0 [shape = 'u32[]', space=smem, size = 0x4, offset = 0x4, fixed_abs, tag = 'smem constant byte address 0x4 - core index']
  #allocation1 [shape = 'u32[144,128]{1,0:T(1,128)}', space=vmem, size = 0x12000, scoped, tag = 'internal scratch']
  #allocation2 [shape = 'f32[10,18,4]{2,1,0:T(8,128)}', space=vmem, size = 0x1e000, scoped, tag = 'scratch operand']
  %s0 = inlined_call_operand.vmem [shape: f32[2,16,16,4], index: 0, kind: input, shape index: {}]
  %s1 = inlined_call_operand.vmem [shape: f32[2,2,16,4], index: 1, kind: input, shape index: {}]
  %s2 = inlined_call_operand.vmem [shape: f32[1,4], index: 2, kind: input, shape index: {}]
  %s3 = inlined_call_operand.vmem [shape: f32[2,16,2,16,8], index: 3, kind: output, shape index: {}]
  %s4 = sld [smem:[#allocation0]]
  $region61: #{tpu_custom_call.1} parent=0
    _
  %s6 = ssub.s32 1, %s4
  %s7 = scalar_select 0, %s6, %s4
  loop: start=0, step=1, limit=6
  $region2: #{tpu_custom_call.1} parent=0 // loop_pre_header
    _
  $region3: #{tpu_custom_call.1} parent=0 // loop_header
    %s9 = sphi 0, %s13
    %p10 = scmp.ge.s32.totalorder %s9, 6
    %s16 = sphi 0, %s28
    %s17 = sphi 0, %s24
    %s18 = sphi 0, %s16
    %s19 = sphi 0, %s17
    %s20 = sphi 0, %s18
    %s21 = sphi 0, %s19
    %s31 = sphi 0, %s33
    %s34 = sphi 0, %s31
    %s35 = sphi 0, %s34
    %s51 = sphi 0, %s35
    %s55 = sphi 0, %s55
    %s57 = sphi 0, %s55
    %s58 = sphi 0, %s57
    %s72 = sphi 0, %s58
    %s76 = sphi 0, %s76
    %s78 = sphi 0, %s76
    %s79 = sphi 0, %s78
    %s93 = sphi 0, %s79
    %s101 = sphi 0, %s103
    %s104 = sphi 0, %s101
    %s105 = sphi 0, %s104
    %s121 = sphi 0, %s105
  $region4: #{tpu_custom_call.1} parent=0 // loop_header_branch
    %12 = sbr.rel (%p10) target = $region8
  $region5: #{tpu_custom_call.1} parent=0 // loop_body
    %s14 = ssub.s32 %s9, 1
    %s15 = ssub.s32 %s9, 2
    %s22 = sadd.s32 1, %s17
    %p23 = scmp.ge.s32.totalorder %s22, 2
    %s24 = scalar_select %p23, 0, %s22
    %s25 = sadd.s32 1, %s16
    %s26 = scalar_select %p23, %s25, %s16
    %p27 = scmp.ge.s32.totalorder %s26, 2
    %s28 = scalar_select %p27, 0, %s26
    %s29 = ssub.s32 %s16, %s28
    %p30 = scmp.eq.s32.totalorder %s29, 0
    %s32 = sadd.s32 %s31, 1
    %s33 = scalar_select %p30, %s31, %s32
    %p36 = pneg %p30
    %p37 = scmp.eq.s32.totalorder %s9, 3
    %p38 = por %p36, %p37
    %p39 = scmp.ne.s32.totalorder %s31, %s34
    %p40 = scmp.eq.s32.totalorder %s9, 0
    %p41 = por %p39, %p40
    %p42 = scmp.ne.s32.totalorder %s31, %s34
    %p43 = scmp.eq.s32.totalorder %s14, 3
    %p44 = por %p42, %p43
    %p45 = scmp.ne.s32.totalorder %s34, %s35
    %p46 = scmp.eq.s32.totalorder %s14, 0
    %p47 = por %p45, %p46
    %p48 = scmp.ne.s32.totalorder %s34, %s35
    %p49 = scmp.eq.s32.totalorder %s15, 3
    %p50 = por %p48, %p49
    %p52 = scmp.ne.s32.totalorder %s35, %s51
    %p53 = scmp.eq.s32.totalorder %s15, 0
    %p54 = por %p52, %p53
    %s56 = sadd.s32 %s55, 1
    %p59 = scmp.eq.s32.totalorder %s9, 3
    %p60 = scmp.ne.s32.totalorder %s55, %s57
    %p61 = scmp.eq.s32.totalorder %s9, 0
    %p62 = por %p60, %p61
    %p63 = scmp.ne.s32.totalorder %s55, %s57
    %p64 = scmp.eq.s32.totalorder %s14, 3
    %p65 = por %p63, %p64
    %p66 = scmp.ne.s32.totalorder %s57, %s58
    %p67 = scmp.eq.s32.totalorder %s14, 0
    %p68 = por %p66, %p67
    %p69 = scmp.ne.s32.totalorder %s57, %s58
    %p70 = scmp.eq.s32.totalorder %s15, 3
    %p71 = por %p69, %p70
    %p73 = scmp.ne.s32.totalorder %s58, %s72
    %p74 = scmp.eq.s32.totalorder %s15, 0
    %p75 = por %p73, %p74
    %s77 = sadd.s32 %s76, 1
    %p80 = scmp.eq.s32.totalorder %s9, 3
    %p81 = scmp.ne.s32.totalorder %s76, %s78
    %p82 = scmp.eq.s32.totalorder %s9, 0
    %p83 = por %p81, %p82
    %p84 = scmp.ne.s32.totalorder %s76, %s78
    %p85 = scmp.eq.s32.totalorder %s14, 3
    %p86 = por %p84, %p85
    %p87 = scmp.ne.s32.totalorder %s78, %s79
    %p88 = scmp.eq.s32.totalorder %s14, 0
    %p89 = por %p87, %p88
    %p90 = scmp.ne.s32.totalorder %s78, %s79
    %p91 = scmp.eq.s32.totalorder %s15, 3
    %p92 = por %p90, %p91
    %p94 = scmp.ne.s32.totalorder %s79, %s93
    %p95 = scmp.eq.s32.totalorder %s15, 0
    %p96 = por %p94, %p95
    %s97 = ssub.s32 %s16, %s28
    %s98 = ssub.s32 %s17, %s24
    %s99 = sor.u32 %s97, %s98
    %p100 = scmp.eq.s32.totalorder %s99, 0
    %s102 = sadd.s32 %s101, 1
    %s103 = scalar_select %p100, %s101, %s102
    %p106 = pneg %p100
    %p107 = scmp.eq.s32.totalorder %s9, 3
    %p108 = por %p106, %p107
    %p109 = scmp.ne.s32.totalorder %s101, %s104
    %p110 = scmp.eq.s32.totalorder %s9, 0
    %p111 = por %p109, %p110
    %p112 = scmp.ne.s32.totalorder %s101, %s104
    %p113 = scmp.eq.s32.totalorder %s14, 3
    %p114 = por %p112, %p113
    %p115 = scmp.ne.s32.totalorder %s104, %s105
    %p116 = scmp.eq.s32.totalorder %s14, 0
    %p117 = por %p115, %p116
    %p118 = scmp.ne.s32.totalorder %s104, %s105
    %p119 = scmp.eq.s32.totalorder %s15, 3
    %p120 = por %p118, %p119
    %p122 = scmp.ne.s32.totalorder %s105, %s121
    %p123 = scmp.eq.s32.totalorder %s15, 0
    %p124 = por %p122, %p123
    %p125 = scmp.le.s32.totalorder 1, %s9
    %p126 = scmp.lt.s32.totalorder %s9, 5
    %p127 = pnand %p125, %p126
    %p128 = pneg %p127
    // Predicated region
    $region9: #{tpu_custom_call.1} parent=5 // pred_check
      _
    $region10: #{tpu_custom_call.1} parent=5 // pred_check_branch
      %130 = sbr.rel (%p127) target = $region12
    $region11: #{tpu_custom_call.1} parent=5 // pred_region
      %s131 = ssub.s32 %s9, 1
      // Predicated region
      $region13: #{tpu_custom_call.1} parent=11 // pred_check
        %p132 = pneg %p68
      $region14: #{tpu_custom_call.1} parent=11 // pred_check_branch
        %134 = sbr.rel (%p132) target = $region16
      $region15: #{tpu_custom_call.1} parent=11 // pred_region
        _
      $region16: #{tpu_custom_call.1} parent=11 // pred_fallthru
        _
      // Predicated region
      $region17: #{tpu_custom_call.1} parent=11 // pred_check
        %p135 = pneg %p89
      $region18: #{tpu_custom_call.1} parent=11 // pred_check_branch
        %137 = sbr.rel (%p135) target = $region20
      $region19: #{tpu_custom_call.1} parent=11 // pred_region
        _
      $region20: #{tpu_custom_call.1} parent=11 // pred_fallthru
        _
    $region12: #{tpu_custom_call.1} parent=5 // pred_fallthru
      _
    %p138 = scmp.lt.s32.totalorder %s9, 4
    // Predicated region
    $region21: #{tpu_custom_call.1} parent=5 // pred_check
      %p139 = pneg %p138
    $region22: #{tpu_custom_call.1} parent=5 // pred_check_branch
      %141 = sbr.rel (%p139) target = $region24
    $region23: #{tpu_custom_call.1} parent=5 // pred_region
      // Predicated region
      $region25: #{tpu_custom_call.1} parent=23 // pred_check
        %p142 = pneg %p41
      $region26: #{tpu_custom_call.1} parent=23 // pred_check_branch
        %144 = sbr.rel (%p142) target = $region28
      $region27: #{tpu_custom_call.1} parent=23 // pred_region
        %p145 = scmp.lt.s32.totalorder %s16, 1
        %s146 = scalar_select %p145, %s16, 1
        %s147 = smul.addr %s146, 32
        %s148 = smul.addr %s147, 8
        %s149 = scalar_lea.vmem %s0, %s148
      $region28: #{tpu_custom_call.1} parent=23 // pred_fallthru
        _
    $region24: #{tpu_custom_call.1} parent=5 // pred_fallthru
      _
    %p150 = scmp.le.s32.totalorder 1, %s9
    %p151 = scmp.lt.s32.totalorder %s9, 5
    %p152 = pnand %p150, %p151
    %p153 = pneg %p152
    // Predicated region
    $region29: #{tpu_custom_call.1} parent=5 // pred_check
      _
    $region30: #{tpu_custom_call.1} parent=5 // pred_check_branch
      %155 = sbr.rel (%p152) target = $region32
    $region31: #{tpu_custom_call.1} parent=5 // pred_region
      %s156 = ssub.s32 %s9, 1
      %p157 = scmp.lt.s32.totalorder %s18, 1
      %s158 = scalar_select %p157, %s18, 1
      %s159 = smul.addr %s158, 32
      %s160 = smul.addr %s159, 8
      %s161 = scalar_lea.vmem %s0, %s160
      %p162 = pneg %p47
      %p163 = pneg %p44
      %p164 = pneg %p68
      %p165 = pneg %p65
      %p166 = pneg %p89
      %p167 = pneg %p86
      %p168 = pneg %p117
      %p169 = pneg %p114
      %s170 = smul.u32 8, %s19
      %p171 = scmp.lt.s32.totalorder %s18, 1
      %s172 = scalar_select %p171, %s18, 1
      %p173 = scmp.lt.s32.totalorder %s170, 15
      %s174 = scalar_select %p173, %s170, 15
      %s175 = smul.addr %s174, 4
      %s176 = smul.addr %s172, 64
      %s177 = sadd.s32 %s175, %s176
      %s178 = smul.addr %s177, 8
      %s179 = scalar_lea.vmem %s3, %s178
      %p180 = scmp.lt.s32.totalorder %s18, 1
      %s181 = scalar_select %p180, %s18, 1
      %s182 = smul.addr %s181, 32
      %s183 = smul.addr %s182, 8
      %s184 = scalar_lea.vmem %s0, %s183
      %s185 = smul.u32 8, %s19
      %p186 = scmp.lt.s32.totalorder %s18, 1
      %s187 = scalar_select %p186, %s18, 1
      %p188 = scmp.lt.s32.totalorder %s185, 15
      %s189 = scalar_select %p188, %s185, 15
      %s190 = smul.addr %s189, 4
      %s191 = smul.addr %s187, 64
      %s192 = sadd.s32 %s190, %s191
      %s193 = smul.addr %s192, 8
      %s194 = scalar_lea.vmem %s3, %s193
      %s195 = smul.u32 8, %s19
      %s196 = smul.u32 %s19, 8
      %vm197 = vcmask 24576
      %198 = vst.msk [vmem:[#allocation2] sm:$0x1] %vm197, 0.0
      %199 = vst.msk [vmem:[#allocation2 + $0x18] sm:$0x1] %vm197, 0.0
      %200 = vst.msk [vmem:[#allocation2 + $0x30] sm:$0x1] %vm197, 0.0
      %201 = vst.msk [vmem:[#allocation2 + $0x48] sm:$0x1] %vm197, 0.0
      %202 = vst.msk [vmem:[#allocation2 + $0x60] sm:$0x1] %vm197, 0.0
      %203 = vst.msk [vmem:[#allocation2 + $0x78] sm:$0x1] %vm197, 0.0
      %204 = vst.msk [vmem:[#allocation2 + $0x90] sm:$0x1] %vm197, 0.0
      %205 = vst.msk [vmem:[#allocation2 + $0xa8] sm:$0x1] %vm197, 0.0
      %206 = vst.msk [vmem:[#allocation2 + $0xc0] sm:$0x1] %vm197, 0.0
      %207 = vst.msk [vmem:[#allocation2 + $0xd8] sm:$0x1] %vm197, 0.0
      %208 = vst.msk [vmem:[#allocation2 + $0x11] sm:$0x1] %vm197, 0.0
      %209 = vst.msk [vmem:[#allocation2 + $0x29] sm:$0x1] %vm197, 0.0
      %210 = vst.msk [vmem:[#allocation2 + $0x41] sm:$0x1] %vm197, 0.0
      %211 = vst.msk [vmem:[#allocation2 + $0x59] sm:$0x1] %vm197, 0.0
      %212 = vst.msk [vmem:[#allocation2 + $0x71] sm:$0x1] %vm197, 0.0
      %213 = vst.msk [vmem:[#allocation2 + $0x89] sm:$0x1] %vm197, 0.0
      %214 = vst.msk [vmem:[#allocation2 + $0xa1] sm:$0x1] %vm197, 0.0
      %215 = vst.msk [vmem:[#allocation2 + $0xb9] sm:$0x1] %vm197, 0.0
      %216 = vst.msk [vmem:[#allocation2 + $0xd1] sm:$0x1] %vm197, 0.0
      %217 = vst.msk [vmem:[#allocation2 + $0xe9] sm:$0x1] %vm197, 0.0
      %s218 = smul.u32 %s196, 16
      %s219 = scalar_lea.vmem %s184, %s218
      %v220 = vld [vmem:[%s219] sm:$0xff]
      %v221 = vld [vmem:[%s219 + $0x8] sm:$0xff]
      %v222 = vld [vmem:[%s219 + $0x10] sm:$0xff]
      %v223 = vld [vmem:[%s219 + $0x18] sm:$0xff]
      %v224 = vld [vmem:[%s219 + $0x20] sm:$0xff]
      %v225 = vld [vmem:[%s219 + $0x28] sm:$0xff]
      %v226 = vld [vmem:[%s219 + $0x30] sm:$0xff]
      %v227 = vld [vmem:[%s219 + $0x38] sm:$0xff]
      %v228 = vld [vmem:[%s219 + $0x40] sm:$0xff]
      %v229 = vld [vmem:[%s219 + $0x48] sm:$0xff]
      %v230 = vld [vmem:[%s219 + $0x50] sm:$0xff]
      %v231 = vld [vmem:[%s219 + $0x58] sm:$0xff]
      %v232 = vld [vmem:[%s219 + $0x60] sm:$0xff]
      %v233 = vld [vmem:[%s219 + $0x68] sm:$0xff]
      %v234 = vld [vmem:[%s219 + $0x70] sm:$0xff]
      %v235 = vld [vmem:[%s219 + $0x78] sm:$0xff]
      %s236 = scalar_lea.vmem [#allocation2], 24
      %vm237 = vcmask 31744
      %238 = vst.msk [vmem:[%s236 + $0x1] sm:$0xff] %vm237, %v220
      %239 = vst.msk [vmem:[%s236 + $0x9] sm:$0xff] %vm237, %v221
      %240 = vst.msk [vmem:[%s236 + $0x19] sm:$0xff] %vm237, %v222
      %241 = vst.msk [vmem:[%s236 + $0x21] sm:$0xff] %vm237, %v223
      %242 = vst.msk [vmem:[%s236 + $0x31] sm:$0xff] %vm237, %v224
      %243 = vst.msk [vmem:[%s236 + $0x39] sm:$0xff] %vm237, %v225
      %244 = vst.msk [vmem:[%s236 + $0x49] sm:$0xff] %vm237, %v226
      %245 = vst.msk [vmem:[%s236 + $0x51] sm:$0xff] %vm237, %v227
      %246 = vst.msk [vmem:[%s236 + $0x61] sm:$0xff] %vm237, %v228
      %247 = vst.msk [vmem:[%s236 + $0x69] sm:$0xff] %vm237, %v229
      %248 = vst.msk [vmem:[%s236 + $0x79] sm:$0xff] %vm237, %v230
      %249 = vst.msk [vmem:[%s236 + $0x81] sm:$0xff] %vm237, %v231
      %250 = vst.msk [vmem:[%s236 + $0x91] sm:$0xff] %vm237, %v232
      %251 = vst.msk [vmem:[%s236 + $0x99] sm:$0xff] %vm237, %v233
      %252 = vst.msk [vmem:[%s236 + $0xa9] sm:$0xff] %vm237, %v234
      %253 = vst.msk [vmem:[%s236 + $0xb1] sm:$0xff] %vm237, %v235
      %p254 = scmp.eq.s32.totalorder %s19, 0
      // Predicated region
      $region33: #{tpu_custom_call.1} parent=31 // pred_check
        %p255 = pneg %p254
      $region34: #{tpu_custom_call.1} parent=31 // pred_check_branch
        %257 = sbr.rel (%p255) target = $region36
      $region35: #{tpu_custom_call.1} parent=31 // pred_region
        %258 = vst.msk [vmem:[#allocation2 + $0x1] sm:$0xff] %vm237, 0.0
        %259 = vst.msk [vmem:[#allocation2 + $0x9] sm:$0xff] %vm237, 0.0
      $region36: #{tpu_custom_call.1} parent=31 // pred_fallthru
        _
      %p260 = scmp.gt.s32.totalorder %s19, 0
      // Predicated region
      $region37: #{tpu_custom_call.1} parent=31 // pred_check
        %p261 = pneg %p260
      $region38: #{tpu_custom_call.1} parent=31 // pred_check_branch
        %263 = sbr.rel (%p261) target = $region40
      $region39: #{tpu_custom_call.1} parent=31 // pred_region
        %s264 = ssub.s32 %s196, 1
        %s265 = smul.u32 %s264, 16
        %s266 = scalar_lea.vmem %s184, %s265
        %v267 = vld [vmem:[%s266] sm:$0xff]
        %v268 = vld [vmem:[%s266 + $0x8] sm:$0xff]
        %269 = vst.msk [vmem:[#allocation2 + $0x1] sm:$0xff] %vm237, %v267
        %270 = vst.msk [vmem:[#allocation2 + $0x9] sm:$0xff] %vm237, %v268
      $region40: #{tpu_custom_call.1} parent=31 // pred_fallthru
        _
      %p271 = scmp.eq.s32.totalorder %s19, 1
      // Predicated region
      $region41: #{tpu_custom_call.1} parent=31 // pred_check
        %p272 = pneg %p271
      $region42: #{tpu_custom_call.1} parent=31 // pred_check_branch
        %274 = sbr.rel (%p272) target = $region44
      $region43: #{tpu_custom_call.1} parent=31 // pred_region
        %s275 = scalar_lea.vmem [#allocation2], 216
        %276 = vst.msk [vmem:[%s275 + $0x1] sm:$0xff] %vm237, 0.0
        %277 = vst.msk [vmem:[%s275 + $0x9] sm:$0xff] %vm237, 0.0
      $region44: #{tpu_custom_call.1} parent=31 // pred_fallthru
        _
      %p278 = scmp.lt.s32.totalorder %s19, 1
      // Predicated region
      $region45: #{tpu_custom_call.1} parent=31 // pred_check
        %p279 = pneg %p278
      $region46: #{tpu_custom_call.1} parent=31 // pred_check_branch
        %281 = sbr.rel (%p279) target = $region48
      $region47: #{tpu_custom_call.1} parent=31 // pred_region
        %s282 = sadd.s32 %s196, 8
        %s283 = smul.u32 %s282, 16
        %s284 = scalar_lea.vmem %s184, %s283
        %v285 = vld [vmem:[%s284] sm:$0xff]
        %v286 = vld [vmem:[%s284 + $0x8] sm:$0xff]
        %s287 = scalar_lea.vmem [#allocation2], 216
        %288 = vst.msk [vmem:[%s287 + $0x1] sm:$0xff] %vm237, %v285
        %289 = vst.msk [vmem:[%s287 + $0x9] sm:$0xff] %vm237, %v286
      $region48: #{tpu_custom_call.1} parent=31 // pred_fallthru
        _
      %v290 = vld [vmem:[#allocation2] sm:$0xff]
      %v291 = vld [vmem:[#allocation2 + $0x8] sm:$0xff]
      %v292 = vld [vmem:[#allocation2 + $0x18] sm:$0xff]
      %v293 = vld [vmem:[#allocation2 + $0x20] sm:$0xff]
      %v294 = vld [vmem:[#allocation2 + $0x30] sm:$0xff]
      %v295 = vld [vmem:[#allocation2 + $0x38] sm:$0xff]
      %v296 = vld [vmem:[#allocation2 + $0x48] sm:$0xff]
      %v297 = vld [vmem:[#allocation2 + $0x50] sm:$0xff]
      %v298 = vld [vmem:[#allocation2 + $0x60] sm:$0xff]
      %v299 = vld [vmem:[#allocation2 + $0x68] sm:$0xff]
      %v300 = vld [vmem:[#allocation2 + $0x78] sm:$0xff]
      %v301 = vld [vmem:[#allocation2 + $0x80] sm:$0xff]
      %v302 = vld [vmem:[#allocation2 + $0x90] sm:$0xff]
      %v303 = vld [vmem:[#allocation2 + $0x98] sm:$0xff]
      %v304 = vld [vmem:[#allocation2 + $0xa8] sm:$0xff]
      %v305 = vld [vmem:[#allocation2 + $0xb0] sm:$0xff]
      %v306 = vld [vmem:[#allocation2 + $0x1] sm:$0xff]
      %v307 = vld [vmem:[#allocation2 + $0x9] sm:$0xff]
      %v308 = vld [vmem:[#allocation2 + $0x19] sm:$0xff]
      %v309 = vld [vmem:[#allocation2 + $0x21] sm:$0xff]
      %v310 = vld [vmem:[#allocation2 + $0x31] sm:$0xff]
      %v311 = vld [vmem:[#allocation2 + $0x39] sm:$0xff]
      %v312 = vld [vmem:[#allocation2 + $0x49] sm:$0xff]
      %v313 = vld [vmem:[#allocation2 + $0x51] sm:$0xff]
      %v314 = vld [vmem:[#allocation2 + $0x61] sm:$0xff]
      %v315 = vld [vmem:[#allocation2 + $0x69] sm:$0xff]
      %v316 = vld [vmem:[#allocation2 + $0x79] sm:$0xff]
      %v317 = vld [vmem:[#allocation2 + $0x81] sm:$0xff]
      %v318 = vld [vmem:[#allocation2 + $0x91] sm:$0xff]
      %v319 = vld [vmem:[#allocation2 + $0x99] sm:$0xff]
      %v320 = vld [vmem:[#allocation2 + $0xa9] sm:$0xff]
      %v321 = vld [vmem:[#allocation2 + $0xb1] sm:$0xff]
      %v322 = vld [vmem:[#allocation2 + $0x2] sm:$0xff]
      %v323 = vld [vmem:[#allocation2 + $0xa] sm:$0xff]
      %v324 = vld [vmem:[#allocation2 + $0x1a] sm:$0xff]
      %v325 = vld [vmem:[#allocation2 + $0x22] sm:$0xff]
      %v326 = vld [vmem:[#allocation2 + $0x32] sm:$0xff]
      %v327 = vld [vmem:[#allocation2 + $0x3a] sm:$0xff]
      %v328 = vld [vmem:[#allocation2 + $0x4a] sm:$0xff]
      %v329 = vld [vmem:[#allocation2 + $0x52] sm:$0xff]
      %v330 = vld [vmem:[#allocation2 + $0x62] sm:$0xff]
      %v331 = vld [vmem:[#allocation2 + $0x6a] sm:$0xff]
      %v332 = vld [vmem:[#allocation2 + $0x7a] sm:$0xff]
      %v333 = vld [vmem:[#allocation2 + $0x82] sm:$0xff]
      %v334 = vld [vmem:[#allocation2 + $0x92] sm:$0xff]
      %v335 = vld [vmem:[#allocation2 + $0x9a] sm:$0xff]
      %v336 = vld [vmem:[#allocation2 + $0xaa] sm:$0xff]
      %v337 = vld [vmem:[#allocation2 + $0xb2] sm:$0xff]
      %v338 = vld [vmem:[%s236] sm:$0xff]
      %v339 = vld [vmem:[%s236 + $0x8] sm:$0xff]
      %v340 = vld [vmem:[%s236 + $0x18] sm:$0xff]
      %v341 = vld [vmem:[%s236 + $0x20] sm:$0xff]
      %v342 = vld [vmem:[%s236 + $0x30] sm:$0xff]
      %v343 = vld [vmem:[%s236 + $0x38] sm:$0xff]
      %v344 = vld [vmem:[%s236 + $0x48] sm:$0xff]
      %v345 = vld [vmem:[%s236 + $0x50] sm:$0xff]
      %v346 = vld [vmem:[%s236 + $0x60] sm:$0xff]
      %v347 = vld [vmem:[%s236 + $0x68] sm:$0xff]
      %v348 = vld [vmem:[%s236 + $0x78] sm:$0xff]
      %v349 = vld [vmem:[%s236 + $0x80] sm:$0xff]
      %v350 = vld [vmem:[%s236 + $0x90] sm:$0xff]
      %v351 = vld [vmem:[%s236 + $0x98] sm:$0xff]
      %v352 = vld [vmem:[%s236 + $0xa8] sm:$0xff]
      %v353 = vld [vmem:[%s236 + $0xb0] sm:$0xff]
      %v354 = vld [vmem:[%s236 + $0x1] sm:$0xff]
      %v355 = vld [vmem:[%s236 + $0x9] sm:$0xff]
      %v356 = vld [vmem:[%s236 + $0x19] sm:$0xff]
      %v357 = vld [vmem:[%s236 + $0x21] sm:$0xff]
      %v358 = vld [vmem:[%s236 + $0x31] sm:$0xff]
      %v359 = vld [vmem:[%s236 + $0x39] sm:$0xff]
      %v360 = vld [vmem:[%s236 + $0x49] sm:$0xff]
      %v361 = vld [vmem:[%s236 + $0x51] sm:$0xff]
      %v362 = vld [vmem:[%s236 + $0x61] sm:$0xff]
      %v363 = vld [vmem:[%s236 + $0x69] sm:$0xff]
      %v364 = vld [vmem:[%s236 + $0x79] sm:$0xff]
      %v365 = vld [vmem:[%s236 + $0x81] sm:$0xff]
      %v366 = vld [vmem:[%s236 + $0x91] sm:$0xff]
      %v367 = vld [vmem:[%s236 + $0x99] sm:$0xff]
      %v368 = vld [vmem:[%s236 + $0xa9] sm:$0xff]
      %v369 = vld [vmem:[%s236 + $0xb1] sm:$0xff]
      %v370 = vld [vmem:[%s236 + $0x2] sm:$0xff]
      %v371 = vld [vmem:[%s236 + $0xa] sm:$0xff]
      %v372 = vld [vmem:[%s236 + $0x1a] sm:$0xff]
      %v373 = vld [vmem:[%s236 + $0x22] sm:$0xff]
      %v374 = vld [vmem:[%s236 + $0x32] sm:$0xff]
      %v375 = vld [vmem:[%s236 + $0x3a] sm:$0xff]
      %v376 = vld [vmem:[%s236 + $0x4a] sm:$0xff]
      %v377 = vld [vmem:[%s236 + $0x52] sm:$0xff]
      %v378 = vld [vmem:[%s236 + $0x62] sm:$0xff]
      %v379 = vld [vmem:[%s236 + $0x6a] sm:$0xff]
      %v380 = vld [vmem:[%s236 + $0x7a] sm:$0xff]
      %v381 = vld [vmem:[%s236 + $0x82] sm:$0xff]
      %v382 = vld [vmem:[%s236 + $0x92] sm:$0xff]
      %v383 = vld [vmem:[%s236 + $0x9a] sm:$0xff]
      %v384 = vld [vmem:[%s236 + $0xaa] sm:$0xff]
      %v385 = vld [vmem:[%s236 + $0xb2] sm:$0xff]
      %s386 = scalar_lea.vmem [#allocation2], 48
      %v387 = vld [vmem:[%s386] sm:$0xff]
      %v388 = vld [vmem:[%s386 + $0x8] sm:$0xff]
      %v389 = vld [vmem:[%s386 + $0x18] sm:$0xff]
      %v390 = vld [vmem:[%s386 + $0x20] sm:$0xff]
      %v391 = vld [vmem:[%s386 + $0x30] sm:$0xff]
      %v392 = vld [vmem:[%s386 + $0x38] sm:$0xff]
      %v393 = vld [vmem:[%s386 + $0x48] sm:$0xff]
      %v394 = vld [vmem:[%s386 + $0x50] sm:$0xff]
      %v395 = vld [vmem:[%s386 + $0x60] sm:$0xff]
      %v396 = vld [vmem:[%s386 + $0x68] sm:$0xff]
      %v397 = vld [vmem:[%s386 + $0x78] sm:$0xff]
      %v398 = vld [vmem:[%s386 + $0x80] sm:$0xff]
      %v399 = vld [vmem:[%s386 + $0x90] sm:$0xff]
      %v400 = vld [vmem:[%s386 + $0x98] sm:$0xff]
      %v401 = vld [vmem:[%s386 + $0xa8] sm:$0xff]
      %v402 = vld [vmem:[%s386 + $0xb0] sm:$0xff]
      %v403 = vld [vmem:[%s386 + $0x1] sm:$0xff]
      %v404 = vld [vmem:[%s386 + $0x9] sm:$0xff]
      %v405 = vld [vmem:[%s386 + $0x19] sm:$0xff]
      %v406 = vld [vmem:[%s386 + $0x21] sm:$0xff]
      %v407 = vld [vmem:[%s386 + $0x31] sm:$0xff]
      %v408 = vld [vmem:[%s386 + $0x39] sm:$0xff]
      %v409 = vld [vmem:[%s386 + $0x49] sm:$0xff]
      %v410 = vld [vmem:[%s386 + $0x51] sm:$0xff]
      %v411 = vld [vmem:[%s386 + $0x61] sm:$0xff]
      %v412 = vld [vmem:[%s386 + $0x69] sm:$0xff]
      %v413 = vld [vmem:[%s386 + $0x79] sm:$0xff]
      %v414 = vld [vmem:[%s386 + $0x81] sm:$0xff]
      %v415 = vld [vmem:[%s386 + $0x91] sm:$0xff]
      %v416 = vld [vmem:[%s386 + $0x99] sm:$0xff]
      %v417 = vld [vmem:[%s386 + $0xa9] sm:$0xff]
      %v418 = vld [vmem:[%s386 + $0xb1] sm:$0xff]
      %v419 = vld [vmem:[%s386 + $0x2] sm:$0xff]
      %v420 = vld [vmem:[%s386 + $0xa] sm:$0xff]
      %v421 = vld [vmem:[%s386 + $0x1a] sm:$0xff]
      %v422 = vld [vmem:[%s386 + $0x22] sm:$0xff]
      %v423 = vld [vmem:[%s386 + $0x32] sm:$0xff]
      %v424 = vld [vmem:[%s386 + $0x3a] sm:$0xff]
      %v425 = vld [vmem:[%s386 + $0x4a] sm:$0xff]
      %v426 = vld [vmem:[%s386 + $0x52] sm:$0xff]
      %v427 = vld [vmem:[%s386 + $0x62] sm:$0xff]
      %v428 = vld [vmem:[%s386 + $0x6a] sm:$0xff]
      %v429 = vld [vmem:[%s386 + $0x7a] sm:$0xff]
      %v430 = vld [vmem:[%s386 + $0x82] sm:$0xff]
      %v431 = vld [vmem:[%s386 + $0x92] sm:$0xff]
      %v432 = vld [vmem:[%s386 + $0x9a] sm:$0xff]
      %v433 = vld [vmem:[%s386 + $0xaa] sm:$0xff]
      %v434 = vld [vmem:[%s386 + $0xb2] sm:$0xff]
      %v435 = vld [vmem:[%s2] sm:$0x1]
      %452 = vrot.lane.b32.xlu0 %v306, 4
      %v453 = vpop.permute.xlu0 %452
      %454 = vrot.lane.b32.xlu0 %v307, 4
      %v455 = vpop.permute.xlu0 %454
      %456 = vrot.lane.b32.xlu0 %v308, 4
      %v457 = vpop.permute.xlu0 %456
      %458 = vrot.lane.b32.xlu0 %v309, 4
      %v459 = vpop.permute.xlu0 %458
      %460 = vrot.lane.b32.xlu0 %v310, 4
      %v461 = vpop.permute.xlu0 %460
      %462 = vrot.lane.b32.xlu0 %v311, 4
      %v463 = vpop.permute.xlu0 %462
      %464 = vrot.lane.b32.xlu0 %v312, 4
      %v465 = vpop.permute.xlu0 %464
      %466 = vrot.lane.b32.xlu0 %v313, 4
      %v467 = vpop.permute.xlu0 %466
      %468 = vrot.lane.b32.xlu0 %v314, 4
      %v469 = vpop.permute.xlu0 %468
      %470 = vrot.lane.b32.xlu0 %v315, 4
      %v471 = vpop.permute.xlu0 %470
      %472 = vrot.lane.b32.xlu0 %v316, 4
      %v473 = vpop.permute.xlu0 %472
      %474 = vrot.lane.b32.xlu0 %v317, 4
      %v475 = vpop.permute.xlu0 %474
      %476 = vrot.lane.b32.xlu0 %v318, 4
      %v477 = vpop.permute.xlu0 %476
      %478 = vrot.lane.b32.xlu0 %v319, 4
      %v479 = vpop.permute.xlu0 %478
      %480 = vrot.lane.b32.xlu0 %v320, 4
      %v481 = vpop.permute.xlu0 %480
      %482 = vrot.lane.b32.xlu0 %v321, 4
      %v483 = vpop.permute.xlu0 %482
      %516 = vrot.lane.b32.xlu0 %v338, 8
      %v517 = vpop.permute.xlu0 %516
      %518 = vrot.lane.b32.xlu0 %v339, 8
      %v519 = vpop.permute.xlu0 %518
      %520 = vrot.lane.b32.xlu0 %v340, 8
      %v521 = vpop.permute.xlu0 %520
      %522 = vrot.lane.b32.xlu0 %v341, 8
      %v523 = vpop.permute.xlu0 %522
      %524 = vrot.lane.b32.xlu0 %v342, 8
      %v525 = vpop.permute.xlu0 %524
      %526 = vrot.lane.b32.xlu0 %v343, 8
      %v527 = vpop.permute.xlu0 %526
      %528 = vrot.lane.b32.xlu0 %v344, 8
      %v529 = vpop.permute.xlu0 %528
      %530 = vrot.lane.b32.xlu0 %v345, 8
      %v531 = vpop.permute.xlu0 %530
      %532 = vrot.lane.b32.xlu0 %v346, 8
      %v533 = vpop.permute.xlu0 %532
      %534 = vrot.lane.b32.xlu0 %v347, 8
      %v535 = vpop.permute.xlu0 %534
      %536 = vrot.lane.b32.xlu0 %v348, 8
      %v537 = vpop.permute.xlu0 %536
      %538 = vrot.lane.b32.xlu0 %v349, 8
      %v539 = vpop.permute.xlu0 %538
      %540 = vrot.lane.b32.xlu0 %v350, 8
      %v541 = vpop.permute.xlu0 %540
      %542 = vrot.lane.b32.xlu0 %v351, 8
      %v543 = vpop.permute.xlu0 %542
      %544 = vrot.lane.b32.xlu0 %v352, 8
      %v545 = vpop.permute.xlu0 %544
      %546 = vrot.lane.b32.xlu0 %v353, 8
      %v547 = vpop.permute.xlu0 %546
      %580 = vrot.lane.b32.xlu0 %v354, 12
      %v581 = vpop.permute.xlu0 %580
      %582 = vrot.lane.b32.xlu0 %v355, 12
      %v583 = vpop.permute.xlu0 %582
      %584 = vrot.lane.b32.xlu0 %v356, 12
      %v585 = vpop.permute.xlu0 %584
      %586 = vrot.lane.b32.xlu0 %v357, 12
      %v587 = vpop.permute.xlu0 %586
      %588 = vrot.lane.b32.xlu0 %v358, 12
      %v589 = vpop.permute.xlu0 %588
      %590 = vrot.lane.b32.xlu0 %v359, 12
      %v591 = vpop.permute.xlu0 %590
      %592 = vrot.lane.b32.xlu0 %v360, 12
      %v593 = vpop.permute.xlu0 %592
      %594 = vrot.lane.b32.xlu0 %v361, 12
      %v595 = vpop.permute.xlu0 %594
      %596 = vrot.lane.b32.xlu0 %v362, 12
      %v597 = vpop.permute.xlu0 %596
      %598 = vrot.lane.b32.xlu0 %v363, 12
      %v599 = vpop.permute.xlu0 %598
      %600 = vrot.lane.b32.xlu0 %v364, 12
      %v601 = vpop.permute.xlu0 %600
      %602 = vrot.lane.b32.xlu0 %v365, 12
      %v603 = vpop.permute.xlu0 %602
      %604 = vrot.lane.b32.xlu0 %v366, 12
      %v605 = vpop.permute.xlu0 %604
      %606 = vrot.lane.b32.xlu0 %v367, 12
      %v607 = vpop.permute.xlu0 %606
      %608 = vrot.lane.b32.xlu0 %v368, 12
      %v609 = vpop.permute.xlu0 %608
      %610 = vrot.lane.b32.xlu0 %v369, 12
      %v611 = vpop.permute.xlu0 %610
      %v628 = vsel %vm237, %v290, %v453
      %v629 = vsel %vm237, %v291, %v455
      %v630 = vsel %vm237, %v292, %v457
      %v631 = vsel %vm237, %v293, %v459
      %v632 = vsel %vm237, %v294, %v461
      %v633 = vsel %vm237, %v295, %v463
      %v634 = vsel %vm237, %v296, %v465
      %v635 = vsel %vm237, %v297, %v467
      %v636 = vsel %vm237, %v298, %v469
      %v637 = vsel %vm237, %v299, %v471
      %v638 = vsel %vm237, %v300, %v473
      %v639 = vsel %vm237, %v301, %v475
      %v640 = vsel %vm237, %v302, %v477
      %v641 = vsel %vm237, %v303, %v479
      %v642 = vsel %vm237, %v304, %v481
      %v643 = vsel %vm237, %v305, %v483
      %vm644 = vcmask 64512
      %v645 = vsel %vm644, %v628, %v517
      %v646 = vsel %vm644, %v629, %v519
      %v647 = vsel %vm644, %v630, %v521
      %v648 = vsel %vm644, %v631, %v523
      %v649 = vsel %vm644, %v632, %v525
      %v650 = vsel %vm644, %v633, %v527
      %v651 = vsel %vm644, %v634, %v529
      %v652 = vsel %vm644, %v635, %v531
      %v653 = vsel %vm644, %v636, %v533
      %v654 = vsel %vm644, %v637, %v535
      %v655 = vsel %vm644, %v638, %v537
      %v656 = vsel %vm644, %v639, %v539
      %v657 = vsel %vm644, %v640, %v541
      %v658 = vsel %vm644, %v641, %v543
      %v659 = vsel %vm644, %v642, %v545
      %v660 = vsel %vm644, %v643, %v547
      %vm661 = vcmask 97280
      %v662 = vsel %vm661, %v645, %v581
      %v663 = vsel %vm661, %v646, %v583
      %v664 = vsel %vm661, %v647, %v585
      %v665 = vsel %vm661, %v648, %v587
      %v666 = vsel %vm661, %v649, %v589
      %v667 = vsel %vm661, %v650, %v591
      %v668 = vsel %vm661, %v651, %v593
      %v669 = vsel %vm661, %v652, %v595
      %v670 = vsel %vm661, %v653, %v597
      %v671 = vsel %vm661, %v654, %v599
      %v672 = vsel %vm661, %v655, %v601
      %v673 = vsel %vm661, %v656, %v603
      %v674 = vsel %vm661, %v657, %v605
      %v675 = vsel %vm661, %v658, %v607
      %v676 = vsel %vm661, %v659, %v609
      %v677 = vsel %vm661, %v660, %v611
      %v678 = vld [vmem:[%s1] sm:$0xff]
      %v679 = vld [vmem:[%s1 + $0x8] sm:$0xff]
      %v681 = vlaneseq
      %v682 = vshrl.u32 %v681, 7
      %v683 = vsub.s32 0, %v682
      %v684 = vrot.slane %v435, %v683
      %vm686 = vcmask 130048
      %v688 = vsel %vm686, %v662, 0
      %v691 = vsel %vm686, %v663, 0
      %v694 = vsel %vm686, %v664, 0
      %v697 = vsel %vm686, %v665, 0
      %v700 = vsel %vm686, %v666, 0
      %v703 = vsel %vm686, %v667, 0
      %v706 = vsel %vm686, %v668, 0
      %v709 = vsel %vm686, %v669, 0
      %v712 = vsel %vm686, %v670, 0
      %v715 = vsel %vm686, %v671, 0
      %v718 = vsel %vm686, %v672, 0
      %v721 = vsel %vm686, %v673, 0
      %v724 = vsel %vm686, %v674, 0
      %v727 = vsel %vm686, %v675, 0
      %v730 = vsel %vm686, %v676, 0
      %v733 = vsel %vm686, %v677, 0
      %735 = vmatprep.subr.mxu0 0.0
      %736 = vmatpush1.msra.mxu0 0.0
      %737 = vmatprep.subr.mxu0 0.0
      %738 = vmatpush1.msra.mxu0 0.0
      %739 = vmatprep.subr.mxu0 0.0
      %740 = vmatpush1.msra.mxu0 0.0
      %741 = vmatprep.subr.mxu0 0.0
      %742 = vmatpush1.msra.mxu0 0.0
      %743 = vmatprep.subr.mxu0 0.0
      %744 = vmatpush1.msra.mxu0 0.0
      %745 = vmatprep.subr.mxu0 0.0
      %746 = vmatpush1.msra.mxu0 0.0
      %747 = vmatprep.subr.mxu0 0.0
      %748 = vmatpush1.msra.mxu0 0.0
      %749 = vmatprep.subr.mxu0 0.0
      %750 = vmatpush1.msra.mxu0 0.0
      %751 = vmatprep.subr.mxu0 0.0
      %752 = vmatpush1.msra.mxu0 0.0
      %753 = vmatprep.subr.mxu0 0.0
      %754 = vmatpush1.msra.mxu0 0.0
      %755 = vmatprep.subr.mxu0 0.0
      %756 = vmatpush1.msra.mxu0 0.0
      %757 = vmatprep.subr.mxu0 0.0
      %758 = vmatpush1.msra.mxu0 0.0
      %759 = vmatprep.subr.mxu0 0.0
      %760 = vmatpush1.msra.mxu0 0.0
      %761 = vmatprep.subr.mxu0 0.0
      %762 = vmatpush1.msra.mxu0 0.0
      %763 = vmatprep.subr.mxu0 0.0
      %764 = vmatpush1.msra.mxu0 %v679
      %765 = vmatprep.subr.mxu0 0.0
      %766 = vmatpush1.msra.mxu0 %v678
      %767 = vmatprep.subr.mxu0 0.0
      %768 = vmatpush2.msra.mxu0 0.0
      %769 = vmatprep.subr.mxu0 0.0
      %770 = vmatpush2.msra.mxu0 0.0
      %771 = vmatprep.subr.mxu0 0.0
      %772 = vmatpush2.msra.mxu0 0.0
      %773 = vmatprep.subr.mxu0 0.0
      %774 = vmatpush2.msra.mxu0 0.0
      %775 = vmatprep.subr.mxu0 0.0
      %776 = vmatpush2.msra.mxu0 0.0
      %777 = vmatprep.subr.mxu0 0.0
      %778 = vmatpush2.msra.mxu0 0.0
      %779 = vmatprep.subr.mxu0 0.0
      %780 = vmatpush2.msra.mxu0 0.0
      %781 = vmatprep.subr.mxu0 0.0
      %782 = vmatpush2.msra.mxu0 0.0
      %783 = vmatprep.subr.mxu0 0.0
      %784 = vmatpush2.msra.mxu0 0.0
      %785 = vmatprep.subr.mxu0 0.0
      %786 = vmatpush2.msra.mxu0 0.0
      %787 = vmatprep.subr.mxu0 0.0
      %788 = vmatpush2.msra.mxu0 0.0
      %789 = vmatprep.subr.mxu0 0.0
      %790 = vmatpush2.msra.mxu0 0.0
      %791 = vmatprep.subr.mxu0 0.0
      %792 = vmatpush2.msra.mxu0 0.0
      %793 = vmatprep.subr.mxu0 0.0
      %794 = vmatpush2.msra.mxu0 0.0
      %795 = vmatprep.subr.mxu0 0.0
      %796 = vmatpush2.msra.mxu0 0.0
      %797 = vmatprep.subr.mxu0 0.0
      %798 = vmatpush2.msra.mxu0 0.0
      %799 = vmatprep.mubr.f32.mxu0 0.0
      %800 = vmatmul.mubr.f32.gmra.mxu0 %v688
      %v801 = vpop.f32.mrf.mxu0
      %v802 = vadd.f32 %v684, %v801
      %v803 = vpop.f32.mrf.mxu0
      %804 = vmatprep.mubr.f32.mxu0 0.0
      %805 = vmatmul.mubr.f32.gmra.mxu0 %v691
      %v806 = vpop.f32.mrf.mxu0
      %v807 = vadd.f32 %v684, %v806
      %v808 = vpop.f32.mrf.mxu0
      %809 = vmatprep.mubr.f32.mxu0 0.0
      %810 = vmatmul.mubr.f32.gmra.mxu0 %v694
      %v811 = vpop.f32.mrf.mxu0
      %v812 = vadd.f32 %v684, %v811
      %v813 = vpop.f32.mrf.mxu0
      %814 = vmatprep.mubr.f32.mxu0 0.0
      %815 = vmatmul.mubr.f32.gmra.mxu0 %v697
      %v816 = vpop.f32.mrf.mxu0
      %v817 = vadd.f32 %v684, %v816
      %v818 = vpop.f32.mrf.mxu0
      %819 = vmatprep.mubr.f32.mxu0 0.0
      %820 = vmatmul.mubr.f32.gmra.mxu0 %v700
      %v821 = vpop.f32.mrf.mxu0
      %v822 = vadd.f32 %v684, %v821
      %v823 = vpop.f32.mrf.mxu0
      %824 = vmatprep.mubr.f32.mxu0 0.0
      %825 = vmatmul.mubr.f32.gmra.mxu0 %v703
      %v826 = vpop.f32.mrf.mxu0
      %v827 = vadd.f32 %v684, %v826
      %v828 = vpop.f32.mrf.mxu0
      %829 = vmatprep.mubr.f32.mxu0 0.0
      %830 = vmatmul.mubr.f32.gmra.mxu0 %v706
      %v831 = vpop.f32.mrf.mxu0
      %v832 = vadd.f32 %v684, %v831
      %v833 = vpop.f32.mrf.mxu0
      %834 = vmatprep.mubr.f32.mxu0 0.0
      %835 = vmatmul.mubr.f32.gmra.mxu0 %v709
      %v836 = vpop.f32.mrf.mxu0
      %v837 = vadd.f32 %v684, %v836
      %v838 = vpop.f32.mrf.mxu0
      %839 = vmatprep.mubr.f32.mxu0 0.0
      %840 = vmatmul.mubr.f32.gmra.mxu0 %v712
      %v841 = vpop.f32.mrf.mxu0
      %v842 = vadd.f32 %v684, %v841
      %v843 = vpop.f32.mrf.mxu0
      %844 = vmatprep.mubr.f32.mxu0 0.0
      %845 = vmatmul.mubr.f32.gmra.mxu0 %v715
      %v846 = vpop.f32.mrf.mxu0
      %v847 = vadd.f32 %v684, %v846
      %v848 = vpop.f32.mrf.mxu0
      %849 = vmatprep.mubr.f32.mxu0 0.0
      %850 = vmatmul.mubr.f32.gmra.mxu0 %v718
      %v851 = vpop.f32.mrf.mxu0
      %v852 = vadd.f32 %v684, %v851
      %v853 = vpop.f32.mrf.mxu0
      %854 = vmatprep.mubr.f32.mxu0 0.0
      %855 = vmatmul.mubr.f32.gmra.mxu0 %v721
      %v856 = vpop.f32.mrf.mxu0
      %v857 = vadd.f32 %v684, %v856
      %v858 = vpop.f32.mrf.mxu0
      %859 = vmatprep.mubr.f32.mxu0 0.0
      %860 = vmatmul.mubr.f32.gmra.mxu0 %v724
      %v861 = vpop.f32.mrf.mxu0
      %v862 = vadd.f32 %v684, %v861
      %v863 = vpop.f32.mrf.mxu0
      %864 = vmatprep.mubr.f32.mxu0 0.0
      %865 = vmatmul.mubr.f32.gmra.mxu0 %v727
      %v866 = vpop.f32.mrf.mxu0
      %v867 = vadd.f32 %v684, %v866
      %v868 = vpop.f32.mrf.mxu0
      %869 = vmatprep.mubr.f32.mxu0 0.0
      %870 = vmatmul.mubr.f32.gmra.mxu0 %v730
      %v871 = vpop.f32.mrf.mxu0
      %v872 = vadd.f32 %v684, %v871
      %v873 = vpop.f32.mrf.mxu0
      %874 = vmatprep.mubr.f32.mxu0 0.0
      %875 = vmatmul.mubr.f32.gmra.mxu0 %v733
      %v876 = vpop.f32.mrf.mxu0
      %v877 = vadd.f32 %v684, %v876
      %v878 = vpop.f32.mrf.mxu0
      %879 = vdwg.mxu0
      %880 = vst.msk [vmem:[%s194] sm:$0xff] %vm237, %v802
      %881 = vst.msk [vmem:[%s194 + $0x8] sm:$0xff] %vm237, %v807
      %882 = vst.msk [vmem:[%s194 + $0x20] sm:$0xff] %vm237, %v812
      %883 = vst.msk [vmem:[%s194 + $0x28] sm:$0xff] %vm237, %v817
      %884 = vst.msk [vmem:[%s194 + $0x40] sm:$0xff] %vm237, %v822
      %885 = vst.msk [vmem:[%s194 + $0x48] sm:$0xff] %vm237, %v827
      %886 = vst.msk [vmem:[%s194 + $0x60] sm:$0xff] %vm237, %v832
      %887 = vst.msk [vmem:[%s194 + $0x68] sm:$0xff] %vm237, %v837
      %888 = vst.msk [vmem:[%s194 + $0x80] sm:$0xff] %vm237, %v842
      %889 = vst.msk [vmem:[%s194 + $0x88] sm:$0xff] %vm237, %v847
      %890 = vst.msk [vmem:[%s194 + $0xa0] sm:$0xff] %vm237, %v852
      %891 = vst.msk [vmem:[%s194 + $0xa8] sm:$0xff] %vm237, %v857
      %892 = vst.msk [vmem:[%s194 + $0xc0] sm:$0xff] %vm237, %v862
      %893 = vst.msk [vmem:[%s194 + $0xc8] sm:$0xff] %vm237, %v867
      %894 = vst.msk [vmem:[%s194 + $0xe0] sm:$0xff] %vm237, %v872
      %895 = vst.msk [vmem:[%s194 + $0xe8] sm:$0xff] %vm237, %v877
      %912 = vrot.lane.b32.xlu0 %v322, 4
      %v913 = vpop.permute.xlu0 %912
      %914 = vrot.lane.b32.xlu0 %v323, 4
      %v915 = vpop.permute.xlu0 %914
      %916 = vrot.lane.b32.xlu0 %v324, 4
      %v917 = vpop.permute.xlu0 %916
      %918 = vrot.lane.b32.xlu0 %v325, 4
      %v919 = vpop.permute.xlu0 %918
      %920 = vrot.lane.b32.xlu0 %v326, 4
      %v921 = vpop.permute.xlu0 %920
      %922 = vrot.lane.b32.xlu0 %v327, 4
      %v923 = vpop.permute.xlu0 %922
      %924 = vrot.lane.b32.xlu0 %v328, 4
      %v925 = vpop.permute.xlu0 %924
      %926 = vrot.lane.b32.xlu0 %v329, 4
      %v927 = vpop.permute.xlu0 %926
      %928 = vrot.lane.b32.xlu0 %v330, 4
      %v929 = vpop.permute.xlu0 %928
      %930 = vrot.lane.b32.xlu0 %v331, 4
      %v931 = vpop.permute.xlu0 %930
      %932 = vrot.lane.b32.xlu0 %v332, 4
      %v933 = vpop.permute.xlu0 %932
      %934 = vrot.lane.b32.xlu0 %v333, 4
      %v935 = vpop.permute.xlu0 %934
      %936 = vrot.lane.b32.xlu0 %v334, 4
      %v937 = vpop.permute.xlu0 %936
      %938 = vrot.lane.b32.xlu0 %v335, 4
      %v939 = vpop.permute.xlu0 %938
      %940 = vrot.lane.b32.xlu0 %v336, 4
      %v941 = vpop.permute.xlu0 %940
      %942 = vrot.lane.b32.xlu0 %v337, 4
      %v943 = vpop.permute.xlu0 %942
      %960 = vrot.lane.b32.xlu0 %v354, 8
      %v961 = vpop.permute.xlu0 %960
      %962 = vrot.lane.b32.xlu0 %v355, 8
      %v963 = vpop.permute.xlu0 %962
      %964 = vrot.lane.b32.xlu0 %v356, 8
      %v965 = vpop.permute.xlu0 %964
      %966 = vrot.lane.b32.xlu0 %v357, 8
      %v967 = vpop.permute.xlu0 %966
      %968 = vrot.lane.b32.xlu0 %v358, 8
      %v969 = vpop.permute.xlu0 %968
      %970 = vrot.lane.b32.xlu0 %v359, 8
      %v971 = vpop.permute.xlu0 %970
      %972 = vrot.lane.b32.xlu0 %v360, 8
      %v973 = vpop.permute.xlu0 %972
      %974 = vrot.lane.b32.xlu0 %v361, 8
      %v975 = vpop.permute.xlu0 %974
      %976 = vrot.lane.b32.xlu0 %v362, 8
      %v977 = vpop.permute.xlu0 %976
      %978 = vrot.lane.b32.xlu0 %v363, 8
      %v979 = vpop.permute.xlu0 %978
      %980 = vrot.lane.b32.xlu0 %v364, 8
      %v981 = vpop.permute.xlu0 %980
      %982 = vrot.lane.b32.xlu0 %v365, 8
      %v983 = vpop.permute.xlu0 %982
      %984 = vrot.lane.b32.xlu0 %v366, 8
      %v985 = vpop.permute.xlu0 %984
      %986 = vrot.lane.b32.xlu0 %v367, 8
      %v987 = vpop.permute.xlu0 %986
      %988 = vrot.lane.b32.xlu0 %v368, 8
      %v989 = vpop.permute.xlu0 %988
      %990 = vrot.lane.b32.xlu0 %v369, 8
      %v991 = vpop.permute.xlu0 %990
      %1024 = vrot.lane.b32.xlu0 %v370, 12
      %v1025 = vpop.permute.xlu0 %1024
      %1026 = vrot.lane.b32.xlu0 %v371, 12
      %v1027 = vpop.permute.xlu0 %1026
      %1028 = vrot.lane.b32.xlu0 %v372, 12
      %v1029 = vpop.permute.xlu0 %1028
      %1030 = vrot.lane.b32.xlu0 %v373, 12
      %v1031 = vpop.permute.xlu0 %1030
      %1032 = vrot.lane.b32.xlu0 %v374, 12
      %v1033 = vpop.permute.xlu0 %1032
      %1034 = vrot.lane.b32.xlu0 %v375, 12
      %v1035 = vpop.permute.xlu0 %1034
      %1036 = vrot.lane.b32.xlu0 %v376, 12
      %v1037 = vpop.permute.xlu0 %1036
      %1038 = vrot.lane.b32.xlu0 %v377, 12
      %v1039 = vpop.permute.xlu0 %1038
      %1040 = vrot.lane.b32.xlu0 %v378, 12
      %v1041 = vpop.permute.xlu0 %1040
      %1042 = vrot.lane.b32.xlu0 %v379, 12
      %v1043 = vpop.permute.xlu0 %1042
      %1044 = vrot.lane.b32.xlu0 %v380, 12
      %v1045 = vpop.permute.xlu0 %1044
      %1046 = vrot.lane.b32.xlu0 %v381, 12
      %v1047 = vpop.permute.xlu0 %1046
      %1048 = vrot.lane.b32.xlu0 %v382, 12
      %v1049 = vpop.permute.xlu0 %1048
      %1050 = vrot.lane.b32.xlu0 %v383, 12
      %v1051 = vpop.permute.xlu0 %1050
      %1052 = vrot.lane.b32.xlu0 %v384, 12
      %v1053 = vpop.permute.xlu0 %1052
      %1054 = vrot.lane.b32.xlu0 %v385, 12
      %v1055 = vpop.permute.xlu0 %1054
      %v1072 = vsel %vm237, %v306, %v913
      %v1073 = vsel %vm237, %v307, %v915
      %v1074 = vsel %vm237, %v308, %v917
      %v1075 = vsel %vm237, %v309, %v919
      %v1076 = vsel %vm237, %v310, %v921
      %v1077 = vsel %vm237, %v311, %v923
      %v1078 = vsel %vm237, %v312, %v925
      %v1079 = vsel %vm237, %v313, %v927
      %v1080 = vsel %vm237, %v314, %v929
      %v1081 = vsel %vm237, %v315, %v931
      %v1082 = vsel %vm237, %v316, %v933
      %v1083 = vsel %vm237, %v317, %v935
      %v1084 = vsel %vm237, %v318, %v937
      %v1085 = vsel %vm237, %v319, %v939
      %v1086 = vsel %vm237, %v320, %v941
      %v1087 = vsel %vm237, %v321, %v943
      %v1088 = vsel %vm644, %v1072, %v961
      %v1089 = vsel %vm644, %v1073, %v963
      %v1090 = vsel %vm644, %v1074, %v965
      %v1091 = vsel %vm644, %v1075, %v967
      %v1092 = vsel %vm644, %v1076, %v969
      %v1093 = vsel %vm644, %v1077, %v971
      %v1094 = vsel %vm644, %v1078, %v973
      %v1095 = vsel %vm644, %v1079, %v975
      %v1096 = vsel %vm644, %v1080, %v977
      %v1097 = vsel %vm644, %v1081, %v979
      %v1098 = vsel %vm644, %v1082, %v981
      %v1099 = vsel %vm644, %v1083, %v983
      %v1100 = vsel %vm644, %v1084, %v985
      %v1101 = vsel %vm644, %v1085, %v987
      %v1102 = vsel %vm644, %v1086, %v989
      %v1103 = vsel %vm644, %v1087, %v991
      %v1104 = vsel %vm661, %v1088, %v1025
      %v1105 = vsel %vm661, %v1089, %v1027
      %v1106 = vsel %vm661, %v1090, %v1029
      %v1107 = vsel %vm661, %v1091, %v1031
      %v1108 = vsel %vm661, %v1092, %v1033
      %v1109 = vsel %vm661, %v1093, %v1035
      %v1110 = vsel %vm661, %v1094, %v1037
      %v1111 = vsel %vm661, %v1095, %v1039
      %v1112 = vsel %vm661, %v1096, %v1041
      %v1113 = vsel %vm661, %v1097, %v1043
      %v1114 = vsel %vm661, %v1098, %v1045
      %v1115 = vsel %vm661, %v1099, %v1047
      %v1116 = vsel %vm661, %v1100, %v1049
      %v1117 = vsel %vm661, %v1101, %v1051
      %v1118 = vsel %vm661, %v1102, %v1053
      %v1119 = vsel %vm661, %v1103, %v1055
      %s1120 = scalar_lea.vmem %s1, 16
      %v1121 = vld [vmem:[%s1120] sm:$0xff]
      %v1122 = vld [vmem:[%s1120 + $0x8] sm:$0xff]
      %v1124 = vsel %vm686, %v1104, 0
      %v1127 = vsel %vm686, %v1105, 0
      %v1130 = vsel %vm686, %v1106, 0
      %v1133 = vsel %vm686, %v1107, 0
      %v1136 = vsel %vm686, %v1108, 0
      %v1139 = vsel %vm686, %v1109, 0
      %v1142 = vsel %vm686, %v1110, 0
      %v1145 = vsel %vm686, %v1111, 0
      %v1148 = vsel %vm686, %v1112, 0
      %v1151 = vsel %vm686, %v1113, 0
      %v1154 = vsel %vm686, %v1114, 0
      %v1157 = vsel %vm686, %v1115, 0
      %v1160 = vsel %vm686, %v1116, 0
      %v1163 = vsel %vm686, %v1117, 0
      %v1166 = vsel %vm686, %v1118, 0
      %v1169 = vsel %vm686, %v1119, 0
      %1171 = vmatprep.subr.mxu0 0.0
      %1172 = vmatpush1.msra.mxu0 0.0
      %1173 = vmatprep.subr.mxu0 0.0
      %1174 = vmatpush1.msra.mxu0 0.0
      %1175 = vmatprep.subr.mxu0 0.0
      %1176 = vmatpush1.msra.mxu0 0.0
      %1177 = vmatprep.subr.mxu0 0.0
      %1178 = vmatpush1.msra.mxu0 0.0
      %1179 = vmatprep.subr.mxu0 0.0
      %1180 = vmatpush1.msra.mxu0 0.0
      %1181 = vmatprep.subr.mxu0 0.0
      %1182 = vmatpush1.msra.mxu0 0.0
      %1183 = vmatprep.subr.mxu0 0.0
      %1184 = vmatpush1.msra.mxu0 0.0
      %1185 = vmatprep.subr.mxu0 0.0
      %1186 = vmatpush1.msra.mxu0 0.0
      %1187 = vmatprep.subr.mxu0 0.0
      %1188 = vmatpush1.msra.mxu0 0.0
      %1189 = vmatprep.subr.mxu0 0.0
      %1190 = vmatpush1.msra.mxu0 0.0
      %1191 = vmatprep.subr.mxu0 0.0
      %1192 = vmatpush1.msra.mxu0 0.0
      %1193 = vmatprep.subr.mxu0 0.0
      %1194 = vmatpush1.msra.mxu0 0.0
      %1195 = vmatprep.subr.mxu0 0.0
      %1196 = vmatpush1.msra.mxu0 0.0
      %1197 = vmatprep.subr.mxu0 0.0
      %1198 = vmatpush1.msra.mxu0 0.0
      %1199 = vmatprep.subr.mxu0 0.0
      %1200 = vmatpush1.msra.mxu0 %v1122
      %1201 = vmatprep.subr.mxu0 0.0
      %1202 = vmatpush1.msra.mxu0 %v1121
      %1203 = vmatprep.subr.mxu0 0.0
      %1204 = vmatpush2.msra.mxu0 0.0
      %1205 = vmatprep.subr.mxu0 0.0
      %1206 = vmatpush2.msra.mxu0 0.0
      %1207 = vmatprep.subr.mxu0 0.0
      %1208 = vmatpush2.msra.mxu0 0.0
      %1209 = vmatprep.subr.mxu0 0.0
      %1210 = vmatpush2.msra.mxu0 0.0
      %1211 = vmatprep.subr.mxu0 0.0
      %1212 = vmatpush2.msra.mxu0 0.0
      %1213 = vmatprep.subr.mxu0 0.0
      %1214 = vmatpush2.msra.mxu0 0.0
      %1215 = vmatprep.subr.mxu0 0.0
      %1216 = vmatpush2.msra.mxu0 0.0
      %1217 = vmatprep.subr.mxu0 0.0
      %1218 = vmatpush2.msra.mxu0 0.0
      %1219 = vmatprep.subr.mxu0 0.0
      %1220 = vmatpush2.msra.mxu0 0.0
      %1221 = vmatprep.subr.mxu0 0.0
      %1222 = vmatpush2.msra.mxu0 0.0
      %1223 = vmatprep.subr.mxu0 0.0
      %1224 = vmatpush2.msra.mxu0 0.0
      %1225 = vmatprep.subr.mxu0 0.0
      %1226 = vmatpush2.msra.mxu0 0.0
      %1227 = vmatprep.subr.mxu0 0.0
      %1228 = vmatpush2.msra.mxu0 0.0
      %1229 = vmatprep.subr.mxu0 0.0
      %1230 = vmatpush2.msra.mxu0 0.0
      %1231 = vmatprep.subr.mxu0 0.0
      %1232 = vmatpush2.msra.mxu0 0.0
      %1233 = vmatprep.subr.mxu0 0.0
      %1234 = vmatpush2.msra.mxu0 0.0
      %1235 = vmatprep.mubr.f32.mxu0 0.0
      %1236 = vmatmul.mubr.f32.gmra.mxu0 %v1124
      %v1237 = vpop.f32.mrf.mxu0
      %v1238 = vadd.f32 %v684, %v1237
      %v1239 = vpop.f32.mrf.mxu0
      %1240 = vmatprep.mubr.f32.mxu0 0.0
      %1241 = vmatmul.mubr.f32.gmra.mxu0 %v1127
      %v1242 = vpop.f32.mrf.mxu0
      %v1243 = vadd.f32 %v684, %v1242
      %v1244 = vpop.f32.mrf.mxu0
      %1245 = vmatprep.mubr.f32.mxu0 0.0
      %1246 = vmatmul.mubr.f32.gmra.mxu0 %v1130
      %v1247 = vpop.f32.mrf.mxu0
      %v1248 = vadd.f32 %v684, %v1247
      %v1249 = vpop.f32.mrf.mxu0
      %1250 = vmatprep.mubr.f32.mxu0 0.0
      %1251 = vmatmul.mubr.f32.gmra.mxu0 %v1133
      %v1252 = vpop.f32.mrf.mxu0
      %v1253 = vadd.f32 %v684, %v1252
      %v1254 = vpop.f32.mrf.mxu0
      %1255 = vmatprep.mubr.f32.mxu0 0.0
      %1256 = vmatmul.mubr.f32.gmra.mxu0 %v1136
      %v1257 = vpop.f32.mrf.mxu0
      %v1258 = vadd.f32 %v684, %v1257
      %v1259 = vpop.f32.mrf.mxu0
      %1260 = vmatprep.mubr.f32.mxu0 0.0
      %1261 = vmatmul.mubr.f32.gmra.mxu0 %v1139
      %v1262 = vpop.f32.mrf.mxu0
      %v1263 = vadd.f32 %v684, %v1262
      %v1264 = vpop.f32.mrf.mxu0
      %1265 = vmatprep.mubr.f32.mxu0 0.0
      %1266 = vmatmul.mubr.f32.gmra.mxu0 %v1142
      %v1267 = vpop.f32.mrf.mxu0
      %v1268 = vadd.f32 %v684, %v1267
      %v1269 = vpop.f32.mrf.mxu0
      %1270 = vmatprep.mubr.f32.mxu0 0.0
      %1271 = vmatmul.mubr.f32.gmra.mxu0 %v1145
      %v1272 = vpop.f32.mrf.mxu0
      %v1273 = vadd.f32 %v684, %v1272
      %v1274 = vpop.f32.mrf.mxu0
      %1275 = vmatprep.mubr.f32.mxu0 0.0
      %1276 = vmatmul.mubr.f32.gmra.mxu0 %v1148
      %v1277 = vpop.f32.mrf.mxu0
      %v1278 = vadd.f32 %v684, %v1277
      %v1279 = vpop.f32.mrf.mxu0
      %1280 = vmatprep.mubr.f32.mxu0 0.0
      %1281 = vmatmul.mubr.f32.gmra.mxu0 %v1151
      %v1282 = vpop.f32.mrf.mxu0
      %v1283 = vadd.f32 %v684, %v1282
      %v1284 = vpop.f32.mrf.mxu0
      %1285 = vmatprep.mubr.f32.mxu0 0.0
      %1286 = vmatmul.mubr.f32.gmra.mxu0 %v1154
      %v1287 = vpop.f32.mrf.mxu0
      %v1288 = vadd.f32 %v684, %v1287
      %v1289 = vpop.f32.mrf.mxu0
      %1290 = vmatprep.mubr.f32.mxu0 0.0
      %1291 = vmatmul.mubr.f32.gmra.mxu0 %v1157
      %v1292 = vpop.f32.mrf.mxu0
      %v1293 = vadd.f32 %v684, %v1292
      %v1294 = vpop.f32.mrf.mxu0
      %1295 = vmatprep.mubr.f32.mxu0 0.0
      %1296 = vmatmul.mubr.f32.gmra.mxu0 %v1160
      %v1297 = vpop.f32.mrf.mxu0
      %v1298 = vadd.f32 %v684, %v1297
      %v1299 = vpop.f32.mrf.mxu0
      %1300 = vmatprep.mubr.f32.mxu0 0.0
      %1301 = vmatmul.mubr.f32.gmra.mxu0 %v1163
      %v1302 = vpop.f32.mrf.mxu0
      %v1303 = vadd.f32 %v684, %v1302
      %v1304 = vpop.f32.mrf.mxu0
      %1305 = vmatprep.mubr.f32.mxu0 0.0
      %1306 = vmatmul.mubr.f32.gmra.mxu0 %v1166
      %v1307 = vpop.f32.mrf.mxu0
      %v1308 = vadd.f32 %v684, %v1307
      %v1309 = vpop.f32.mrf.mxu0
      %1310 = vmatprep.mubr.f32.mxu0 0.0
      %1311 = vmatmul.mubr.f32.gmra.mxu0 %v1169
      %v1312 = vpop.f32.mrf.mxu0
      %v1313 = vadd.f32 %v684, %v1312
      %v1314 = vpop.f32.mrf.mxu0
      %1315 = vdwg.mxu0
      %1332 = vrot.lane.b32.xlu0 %v1238, 4
      %v1333 = vpop.permute.xlu0 %1332
      %1334 = vrot.lane.b32.xlu0 %v1243, 4
      %v1335 = vpop.permute.xlu0 %1334
      %1336 = vrot.lane.b32.xlu0 %v1248, 4
      %v1337 = vpop.permute.xlu0 %1336
      %1338 = vrot.lane.b32.xlu0 %v1253, 4
      %v1339 = vpop.permute.xlu0 %1338
      %1340 = vrot.lane.b32.xlu0 %v1258, 4
      %v1341 = vpop.permute.xlu0 %1340
      %1342 = vrot.lane.b32.xlu0 %v1263, 4
      %v1343 = vpop.permute.xlu0 %1342
      %1344 = vrot.lane.b32.xlu0 %v1268, 4
      %v1345 = vpop.permute.xlu0 %1344
      %1346 = vrot.lane.b32.xlu0 %v1273, 4
      %v1347 = vpop.permute.xlu0 %1346
      %1348 = vrot.lane.b32.xlu0 %v1278, 4
      %v1349 = vpop.permute.xlu0 %1348
      %1350 = vrot.lane.b32.xlu0 %v1283, 4
      %v1351 = vpop.permute.xlu0 %1350
      %1352 = vrot.lane.b32.xlu0 %v1288, 4
      %v1353 = vpop.permute.xlu0 %1352
      %1354 = vrot.lane.b32.xlu0 %v1293, 4
      %v1355 = vpop.permute.xlu0 %1354
      %1356 = vrot.lane.b32.xlu0 %v1298, 4
      %v1357 = vpop.permute.xlu0 %1356
      %1358 = vrot.lane.b32.xlu0 %v1303, 4
      %v1359 = vpop.permute.xlu0 %1358
      %1360 = vrot.lane.b32.xlu0 %v1308, 4
      %v1361 = vpop.permute.xlu0 %1360
      %1362 = vrot.lane.b32.xlu0 %v1313, 4
      %v1363 = vpop.permute.xlu0 %1362
      %vm1380 = vcmask 64544
      %1381 = vst.msk [vmem:[%s194] sm:$0xff] %vm1380, %v1333
      %1382 = vst.msk [vmem:[%s194 + $0x8] sm:$0xff] %vm1380, %v1335
      %1383 = vst.msk [vmem:[%s194 + $0x20] sm:$0xff] %vm1380, %v1337
      %1384 = vst.msk [vmem:[%s194 + $0x28] sm:$0xff] %vm1380, %v1339
      %1385 = vst.msk [vmem:[%s194 + $0x40] sm:$0xff] %vm1380, %v1341
      %1386 = vst.msk [vmem:[%s194 + $0x48] sm:$0xff] %vm1380, %v1343
      %1387 = vst.msk [vmem:[%s194 + $0x60] sm:$0xff] %vm1380, %v1345
      %1388 = vst.msk [vmem:[%s194 + $0x68] sm:$0xff] %vm1380, %v1347
      %1389 = vst.msk [vmem:[%s194 + $0x80] sm:$0xff] %vm1380, %v1349
      %1390 = vst.msk [vmem:[%s194 + $0x88] sm:$0xff] %vm1380, %v1351
      %1391 = vst.msk [vmem:[%s194 + $0xa0] sm:$0xff] %vm1380, %v1353
      %1392 = vst.msk [vmem:[%s194 + $0xa8] sm:$0xff] %vm1380, %v1355
      %1393 = vst.msk [vmem:[%s194 + $0xc0] sm:$0xff] %vm1380, %v1357
      %1394 = vst.msk [vmem:[%s194 + $0xc8] sm:$0xff] %vm1380, %v1359
      %1395 = vst.msk [vmem:[%s194 + $0xe0] sm:$0xff] %vm1380, %v1361
      %1396 = vst.msk [vmem:[%s194 + $0xe8] sm:$0xff] %vm1380, %v1363
      %1397 = vrot.lane.b32.xlu0 %v354, 4
      %v1398 = vpop.permute.xlu0 %1397
      %1399 = vrot.lane.b32.xlu0 %v355, 4
      %v1400 = vpop.permute.xlu0 %1399
      %1401 = vrot.lane.b32.xlu0 %v356, 4
      %v1402 = vpop.permute.xlu0 %1401
      %1403 = vrot.lane.b32.xlu0 %v357, 4
      %v1404 = vpop.permute.xlu0 %1403
      %1405 = vrot.lane.b32.xlu0 %v358, 4
      %v1406 = vpop.permute.xlu0 %1405
      %1407 = vrot.lane.b32.xlu0 %v359, 4
      %v1408 = vpop.permute.xlu0 %1407
      %1409 = vrot.lane.b32.xlu0 %v360, 4
      %v1410 = vpop.permute.xlu0 %1409
      %1411 = vrot.lane.b32.xlu0 %v361, 4
      %v1412 = vpop.permute.xlu0 %1411
      %1413 = vrot.lane.b32.xlu0 %v362, 4
      %v1414 = vpop.permute.xlu0 %1413
      %1415 = vrot.lane.b32.xlu0 %v363, 4
      %v1416 = vpop.permute.xlu0 %1415
      %1417 = vrot.lane.b32.xlu0 %v364, 4
      %v1418 = vpop.permute.xlu0 %1417
      %1419 = vrot.lane.b32.xlu0 %v365, 4
      %v1420 = vpop.permute.xlu0 %1419
      %1421 = vrot.lane.b32.xlu0 %v366, 4
      %v1422 = vpop.permute.xlu0 %1421
      %1423 = vrot.lane.b32.xlu0 %v367, 4
      %v1424 = vpop.permute.xlu0 %1423
      %1425 = vrot.lane.b32.xlu0 %v368, 4
      %v1426 = vpop.permute.xlu0 %1425
      %1427 = vrot.lane.b32.xlu0 %v369, 4
      %v1428 = vpop.permute.xlu0 %1427
      %1461 = vrot.lane.b32.xlu0 %v387, 8
      %v1462 = vpop.permute.xlu0 %1461
      %1463 = vrot.lane.b32.xlu0 %v388, 8
      %v1464 = vpop.permute.xlu0 %1463
      %1465 = vrot.lane.b32.xlu0 %v389, 8
      %v1466 = vpop.permute.xlu0 %1465
      %1467 = vrot.lane.b32.xlu0 %v390, 8
      %v1468 = vpop.permute.xlu0 %1467
      %1469 = vrot.lane.b32.xlu0 %v391, 8
      %v1470 = vpop.permute.xlu0 %1469
      %1471 = vrot.lane.b32.xlu0 %v392, 8
      %v1472 = vpop.permute.xlu0 %1471
      %1473 = vrot.lane.b32.xlu0 %v393, 8
      %v1474 = vpop.permute.xlu0 %1473
      %1475 = vrot.lane.b32.xlu0 %v394, 8
      %v1476 = vpop.permute.xlu0 %1475
      %1477 = vrot.lane.b32.xlu0 %v395, 8
      %v1478 = vpop.permute.xlu0 %1477
      %1479 = vrot.lane.b32.xlu0 %v396, 8
      %v1480 = vpop.permute.xlu0 %1479
      %1481 = vrot.lane.b32.xlu0 %v397, 8
      %v1482 = vpop.permute.xlu0 %1481
      %1483 = vrot.lane.b32.xlu0 %v398, 8
      %v1484 = vpop.permute.xlu0 %1483
      %1485 = vrot.lane.b32.xlu0 %v399, 8
      %v1486 = vpop.permute.xlu0 %1485
      %1487 = vrot.lane.b32.xlu0 %v400, 8
      %v1488 = vpop.permute.xlu0 %1487
      %1489 = vrot.lane.b32.xlu0 %v401, 8
      %v1490 = vpop.permute.xlu0 %1489
      %1491 = vrot.lane.b32.xlu0 %v402, 8
      %v1492 = vpop.permute.xlu0 %1491
      %1525 = vrot.lane.b32.xlu0 %v403, 12
      %v1526 = vpop.permute.xlu0 %1525
      %1527 = vrot.lane.b32.xlu0 %v404, 12
      %v1528 = vpop.permute.xlu0 %1527
      %1529 = vrot.lane.b32.xlu0 %v405, 12
      %v1530 = vpop.permute.xlu0 %1529
      %1531 = vrot.lane.b32.xlu0 %v406, 12
      %v1532 = vpop.permute.xlu0 %1531
      %1533 = vrot.lane.b32.xlu0 %v407, 12
      %v1534 = vpop.permute.xlu0 %1533
      %1535 = vrot.lane.b32.xlu0 %v408, 12
      %v1536 = vpop.permute.xlu0 %1535
      %1537 = vrot.lane.b32.xlu0 %v409, 12
      %v1538 = vpop.permute.xlu0 %1537
      %1539 = vrot.lane.b32.xlu0 %v410, 12
      %v1540 = vpop.permute.xlu0 %1539
      %1541 = vrot.lane.b32.xlu0 %v411, 12
      %v1542 = vpop.permute.xlu0 %1541
      %1543 = vrot.lane.b32.xlu0 %v412, 12
      %v1544 = vpop.permute.xlu0 %1543
      %1545 = vrot.lane.b32.xlu0 %v413, 12
      %v1546 = vpop.permute.xlu0 %1545
      %1547 = vrot.lane.b32.xlu0 %v414, 12
      %v1548 = vpop.permute.xlu0 %1547
      %1549 = vrot.lane.b32.xlu0 %v415, 12
      %v1550 = vpop.permute.xlu0 %1549
      %1551 = vrot.lane.b32.xlu0 %v416, 12
      %v1552 = vpop.permute.xlu0 %1551
      %1553 = vrot.lane.b32.xlu0 %v417, 12
      %v1554 = vpop.permute.xlu0 %1553
      %1555 = vrot.lane.b32.xlu0 %v418, 12
      %v1556 = vpop.permute.xlu0 %1555
      %v1573 = vsel %vm237, %v338, %v1398
      %v1574 = vsel %vm237, %v339, %v1400
      %v1575 = vsel %vm237, %v340, %v1402
      %v1576 = vsel %vm237, %v341, %v1404
      %v1577 = vsel %vm237, %v342, %v1406
      %v1578 = vsel %vm237, %v343, %v1408
      %v1579 = vsel %vm237, %v344, %v1410
      %v1580 = vsel %vm237, %v345, %v1412
      %v1581 = vsel %vm237, %v346, %v1414
      %v1582 = vsel %vm237, %v347, %v1416
      %v1583 = vsel %vm237, %v348, %v1418
      %v1584 = vsel %vm237, %v349, %v1420
      %v1585 = vsel %vm237, %v350, %v1422
      %v1586 = vsel %vm237, %v351, %v1424
      %v1587 = vsel %vm237, %v352, %v1426
      %v1588 = vsel %vm237, %v353, %v1428
      %v1589 = vsel %vm644, %v1573, %v1462
      %v1590 = vsel %vm644, %v1574, %v1464
      %v1591 = vsel %vm644, %v1575, %v1466
      %v1592 = vsel %vm644, %v1576, %v1468
      %v1593 = vsel %vm644, %v1577, %v1470
      %v1594 = vsel %vm644, %v1578, %v1472
      %v1595 = vsel %vm644, %v1579, %v1474
      %v1596 = vsel %vm644, %v1580, %v1476
      %v1597 = vsel %vm644, %v1581, %v1478
      %v1598 = vsel %vm644, %v1582, %v1480
      %v1599 = vsel %vm644, %v1583, %v1482
      %v1600 = vsel %vm644, %v1584, %v1484
      %v1601 = vsel %vm644, %v1585, %v1486
      %v1602 = vsel %vm644, %v1586, %v1488
      %v1603 = vsel %vm644, %v1587, %v1490
      %v1604 = vsel %vm644, %v1588, %v1492
      %v1605 = vsel %vm661, %v1589, %v1526
      %v1606 = vsel %vm661, %v1590, %v1528
      %v1607 = vsel %vm661, %v1591, %v1530
      %v1608 = vsel %vm661, %v1592, %v1532
      %v1609 = vsel %vm661, %v1593, %v1534
      %v1610 = vsel %vm661, %v1594, %v1536
      %v1611 = vsel %vm661, %v1595, %v1538
      %v1612 = vsel %vm661, %v1596, %v1540
      %v1613 = vsel %vm661, %v1597, %v1542
      %v1614 = vsel %vm661, %v1598, %v1544
      %v1615 = vsel %vm661, %v1599, %v1546
      %v1616 = vsel %vm661, %v1600, %v1548
      %v1617 = vsel %vm661, %v1601, %v1550
      %v1618 = vsel %vm661, %v1602, %v1552
      %v1619 = vsel %vm661, %v1603, %v1554
      %v1620 = vsel %vm661, %v1604, %v1556
      %s1621 = scalar_lea.vmem %s1, 32
      %v1622 = vld [vmem:[%s1621] sm:$0xff]
      %v1623 = vld [vmem:[%s1621 + $0x8] sm:$0xff]
      %v1625 = vsel %vm686, %v1605, 0
      %v1628 = vsel %vm686, %v1606, 0
      %v1631 = vsel %vm686, %v1607, 0
      %v1634 = vsel %vm686, %v1608, 0
      %v1637 = vsel %vm686, %v1609, 0
      %v1640 = vsel %vm686, %v1610, 0
      %v1643 = vsel %vm686, %v1611, 0
      %v1646 = vsel %vm686, %v1612, 0
      %v1649 = vsel %vm686, %v1613, 0
      %v1652 = vsel %vm686, %v1614, 0
      %v1655 = vsel %vm686, %v1615, 0
      %v1658 = vsel %vm686, %v1616, 0
      %v1661 = vsel %vm686, %v1617, 0
      %v1664 = vsel %vm686, %v1618, 0
      %v1667 = vsel %vm686, %v1619, 0
      %v1670 = vsel %vm686, %v1620, 0
      %1672 = vmatprep.subr.mxu0 0.0
      %1673 = vmatpush1.msra.mxu0 0.0
      %1674 = vmatprep.subr.mxu0 0.0
      %1675 = vmatpush1.msra.mxu0 0.0
      %1676 = vmatprep.subr.mxu0 0.0
      %1677 = vmatpush1.msra.mxu0 0.0
      %1678 = vmatprep.subr.mxu0 0.0
      %1679 = vmatpush1.msra.mxu0 0.0
      %1680 = vmatprep.subr.mxu0 0.0
      %1681 = vmatpush1.msra.mxu0 0.0
      %1682 = vmatprep.subr.mxu0 0.0
      %1683 = vmatpush1.msra.mxu0 0.0
      %1684 = vmatprep.subr.mxu0 0.0
      %1685 = vmatpush1.msra.mxu0 0.0
      %1686 = vmatprep.subr.mxu0 0.0
      %1687 = vmatpush1.msra.mxu0 0.0
      %1688 = vmatprep.subr.mxu0 0.0
      %1689 = vmatpush1.msra.mxu0 0.0
      %1690 = vmatprep.subr.mxu0 0.0
      %1691 = vmatpush1.msra.mxu0 0.0
      %1692 = vmatprep.subr.mxu0 0.0
      %1693 = vmatpush1.msra.mxu0 0.0
      %1694 = vmatprep.subr.mxu0 0.0
      %1695 = vmatpush1.msra.mxu0 0.0
      %1696 = vmatprep.subr.mxu0 0.0
      %1697 = vmatpush1.msra.mxu0 0.0
      %1698 = vmatprep.subr.mxu0 0.0
      %1699 = vmatpush1.msra.mxu0 0.0
      %1700 = vmatprep.subr.mxu0 0.0
      %1701 = vmatpush1.msra.mxu0 %v1623
      %1702 = vmatprep.subr.mxu0 0.0
      %1703 = vmatpush1.msra.mxu0 %v1622
      %1704 = vmatprep.subr.mxu0 0.0
      %1705 = vmatpush2.msra.mxu0 0.0
      %1706 = vmatprep.subr.mxu0 0.0
      %1707 = vmatpush2.msra.mxu0 0.0
      %1708 = vmatprep.subr.mxu0 0.0
      %1709 = vmatpush2.msra.mxu0 0.0
      %1710 = vmatprep.subr.mxu0 0.0
      %1711 = vmatpush2.msra.mxu0 0.0
      %1712 = vmatprep.subr.mxu0 0.0
      %1713 = vmatpush2.msra.mxu0 0.0
      %1714 = vmatprep.subr.mxu0 0.0
      %1715 = vmatpush2.msra.mxu0 0.0
      %1716 = vmatprep.subr.mxu0 0.0
      %1717 = vmatpush2.msra.mxu0 0.0
      %1718 = vmatprep.subr.mxu0 0.0
      %1719 = vmatpush2.msra.mxu0 0.0
      %1720 = vmatprep.subr.mxu0 0.0
      %1721 = vmatpush2.msra.mxu0 0.0
      %1722 = vmatprep.subr.mxu0 0.0
      %1723 = vmatpush2.msra.mxu0 0.0
      %1724 = vmatprep.subr.mxu0 0.0
      %1725 = vmatpush2.msra.mxu0 0.0
      %1726 = vmatprep.subr.mxu0 0.0
      %1727 = vmatpush2.msra.mxu0 0.0
      %1728 = vmatprep.subr.mxu0 0.0
      %1729 = vmatpush2.msra.mxu0 0.0
      %1730 = vmatprep.subr.mxu0 0.0
      %1731 = vmatpush2.msra.mxu0 0.0
      %1732 = vmatprep.subr.mxu0 0.0
      %1733 = vmatpush2.msra.mxu0 0.0
      %1734 = vmatprep.subr.mxu0 0.0
      %1735 = vmatpush2.msra.mxu0 0.0
      %1736 = vmatprep.mubr.f32.mxu0 0.0
      %1737 = vmatmul.mubr.f32.gmra.mxu0 %v1625
      %v1738 = vpop.f32.mrf.mxu0
      %v1739 = vadd.f32 %v684, %v1738
      %v1740 = vpop.f32.mrf.mxu0
      %1741 = vmatprep.mubr.f32.mxu0 0.0
      %1742 = vmatmul.mubr.f32.gmra.mxu0 %v1628
      %v1743 = vpop.f32.mrf.mxu0
      %v1744 = vadd.f32 %v684, %v1743
      %v1745 = vpop.f32.mrf.mxu0
      %1746 = vmatprep.mubr.f32.mxu0 0.0
      %1747 = vmatmul.mubr.f32.gmra.mxu0 %v1631
      %v1748 = vpop.f32.mrf.mxu0
      %v1749 = vadd.f32 %v684, %v1748
      %v1750 = vpop.f32.mrf.mxu0
      %1751 = vmatprep.mubr.f32.mxu0 0.0
      %1752 = vmatmul.mubr.f32.gmra.mxu0 %v1634
      %v1753 = vpop.f32.mrf.mxu0
      %v1754 = vadd.f32 %v684, %v1753
      %v1755 = vpop.f32.mrf.mxu0
      %1756 = vmatprep.mubr.f32.mxu0 0.0
      %1757 = vmatmul.mubr.f32.gmra.mxu0 %v1637
      %v1758 = vpop.f32.mrf.mxu0
      %v1759 = vadd.f32 %v684, %v1758
      %v1760 = vpop.f32.mrf.mxu0
      %1761 = vmatprep.mubr.f32.mxu0 0.0
      %1762 = vmatmul.mubr.f32.gmra.mxu0 %v1640
      %v1763 = vpop.f32.mrf.mxu0
      %v1764 = vadd.f32 %v684, %v1763
      %v1765 = vpop.f32.mrf.mxu0
      %1766 = vmatprep.mubr.f32.mxu0 0.0
      %1767 = vmatmul.mubr.f32.gmra.mxu0 %v1643
      %v1768 = vpop.f32.mrf.mxu0
      %v1769 = vadd.f32 %v684, %v1768
      %v1770 = vpop.f32.mrf.mxu0
      %1771 = vmatprep.mubr.f32.mxu0 0.0
      %1772 = vmatmul.mubr.f32.gmra.mxu0 %v1646
      %v1773 = vpop.f32.mrf.mxu0
      %v1774 = vadd.f32 %v684, %v1773
      %v1775 = vpop.f32.mrf.mxu0
      %1776 = vmatprep.mubr.f32.mxu0 0.0
      %1777 = vmatmul.mubr.f32.gmra.mxu0 %v1649
      %v1778 = vpop.f32.mrf.mxu0
      %v1779 = vadd.f32 %v684, %v1778
      %v1780 = vpop.f32.mrf.mxu0
      %1781 = vmatprep.mubr.f32.mxu0 0.0
      %1782 = vmatmul.mubr.f32.gmra.mxu0 %v1652
      %v1783 = vpop.f32.mrf.mxu0
      %v1784 = vadd.f32 %v684, %v1783
      %v1785 = vpop.f32.mrf.mxu0
      %1786 = vmatprep.mubr.f32.mxu0 0.0
      %1787 = vmatmul.mubr.f32.gmra.mxu0 %v1655
      %v1788 = vpop.f32.mrf.mxu0
      %v1789 = vadd.f32 %v684, %v1788
      %v1790 = vpop.f32.mrf.mxu0
      %1791 = vmatprep.mubr.f32.mxu0 0.0
      %1792 = vmatmul.mubr.f32.gmra.mxu0 %v1658
      %v1793 = vpop.f32.mrf.mxu0
      %v1794 = vadd.f32 %v684, %v1793
      %v1795 = vpop.f32.mrf.mxu0
      %1796 = vmatprep.mubr.f32.mxu0 0.0
      %1797 = vmatmul.mubr.f32.gmra.mxu0 %v1661
      %v1798 = vpop.f32.mrf.mxu0
      %v1799 = vadd.f32 %v684, %v1798
      %v1800 = vpop.f32.mrf.mxu0
      %1801 = vmatprep.mubr.f32.mxu0 0.0
      %1802 = vmatmul.mubr.f32.gmra.mxu0 %v1664
      %v1803 = vpop.f32.mrf.mxu0
      %v1804 = vadd.f32 %v684, %v1803
      %v1805 = vpop.f32.mrf.mxu0
      %1806 = vmatprep.mubr.f32.mxu0 0.0
      %1807 = vmatmul.mubr.f32.gmra.mxu0 %v1667
      %v1808 = vpop.f32.mrf.mxu0
      %v1809 = vadd.f32 %v684, %v1808
      %v1810 = vpop.f32.mrf.mxu0
      %1811 = vmatprep.mubr.f32.mxu0 0.0
      %1812 = vmatmul.mubr.f32.gmra.mxu0 %v1670
      %v1813 = vpop.f32.mrf.mxu0
      %v1814 = vadd.f32 %v684, %v1813
      %v1815 = vpop.f32.mrf.mxu0
      %1816 = vdwg.mxu0
      %s1817 = scalar_lea.vmem %s194, 16
      %1818 = vst.msk [vmem:[%s1817] sm:$0xff] %vm237, %v1739
      %1819 = vst.msk [vmem:[%s1817 + $0x8] sm:$0xff] %vm237, %v1744
      %1820 = vst.msk [vmem:[%s1817 + $0x20] sm:$0xff] %vm237, %v1749
      %1821 = vst.msk [vmem:[%s1817 + $0x28] sm:$0xff] %vm237, %v1754
      %1822 = vst.msk [vmem:[%s1817 + $0x40] sm:$0xff] %vm237, %v1759
      %1823 = vst.msk [vmem:[%s1817 + $0x48] sm:$0xff] %vm237, %v1764
      %1824 = vst.msk [vmem:[%s1817 + $0x60] sm:$0xff] %vm237, %v1769
      %1825 = vst.msk [vmem:[%s1817 + $0x68] sm:$0xff] %vm237, %v1774
      %1826 = vst.msk [vmem:[%s1817 + $0x80] sm:$0xff] %vm237, %v1779
      %1827 = vst.msk [vmem:[%s1817 + $0x88] sm:$0xff] %vm237, %v1784
      %1828 = vst.msk [vmem:[%s1817 + $0xa0] sm:$0xff] %vm237, %v1789
      %1829 = vst.msk [vmem:[%s1817 + $0xa8] sm:$0xff] %vm237, %v1794
      %1830 = vst.msk [vmem:[%s1817 + $0xc0] sm:$0xff] %vm237, %v1799
      %1831 = vst.msk [vmem:[%s1817 + $0xc8] sm:$0xff] %vm237, %v1804
      %1832 = vst.msk [vmem:[%s1817 + $0xe0] sm:$0xff] %vm237, %v1809
      %1833 = vst.msk [vmem:[%s1817 + $0xe8] sm:$0xff] %vm237, %v1814
      %1834 = vrot.lane.b32.xlu0 %v370, 4
      %v1835 = vpop.permute.xlu0 %1834
      %1836 = vrot.lane.b32.xlu0 %v371, 4
      %v1837 = vpop.permute.xlu0 %1836
      %1838 = vrot.lane.b32.xlu0 %v372, 4
      %v1839 = vpop.permute.xlu0 %1838
      %1840 = vrot.lane.b32.xlu0 %v373, 4
      %v1841 = vpop.permute.xlu0 %1840
      %1842 = vrot.lane.b32.xlu0 %v374, 4
      %v1843 = vpop.permute.xlu0 %1842
      %1844 = vrot.lane.b32.xlu0 %v375, 4
      %v1845 = vpop.permute.xlu0 %1844
      %1846 = vrot.lane.b32.xlu0 %v376, 4
      %v1847 = vpop.permute.xlu0 %1846
      %1848 = vrot.lane.b32.xlu0 %v377, 4
      %v1849 = vpop.permute.xlu0 %1848
      %1850 = vrot.lane.b32.xlu0 %v378, 4
      %v1851 = vpop.permute.xlu0 %1850
      %1852 = vrot.lane.b32.xlu0 %v379, 4
      %v1853 = vpop.permute.xlu0 %1852
      %1854 = vrot.lane.b32.xlu0 %v380, 4
      %v1855 = vpop.permute.xlu0 %1854
      %1856 = vrot.lane.b32.xlu0 %v381, 4
      %v1857 = vpop.permute.xlu0 %1856
      %1858 = vrot.lane.b32.xlu0 %v382, 4
      %v1859 = vpop.permute.xlu0 %1858
      %1860 = vrot.lane.b32.xlu0 %v383, 4
      %v1861 = vpop.permute.xlu0 %1860
      %1862 = vrot.lane.b32.xlu0 %v384, 4
      %v1863 = vpop.permute.xlu0 %1862
      %1864 = vrot.lane.b32.xlu0 %v385, 4
      %v1865 = vpop.permute.xlu0 %1864
      %1882 = vrot.lane.b32.xlu0 %v403, 8
      %v1883 = vpop.permute.xlu0 %1882
      %1884 = vrot.lane.b32.xlu0 %v404, 8
      %v1885 = vpop.permute.xlu0 %1884
      %1886 = vrot.lane.b32.xlu0 %v405, 8
      %v1887 = vpop.permute.xlu0 %1886
      %1888 = vrot.lane.b32.xlu0 %v406, 8
      %v1889 = vpop.permute.xlu0 %1888
      %1890 = vrot.lane.b32.xlu0 %v407, 8
      %v1891 = vpop.permute.xlu0 %1890
      %1892 = vrot.lane.b32.xlu0 %v408, 8
      %v1893 = vpop.permute.xlu0 %1892
      %1894 = vrot.lane.b32.xlu0 %v409, 8
      %v1895 = vpop.permute.xlu0 %1894
      %1896 = vrot.lane.b32.xlu0 %v410, 8
      %v1897 = vpop.permute.xlu0 %1896
      %1898 = vrot.lane.b32.xlu0 %v411, 8
      %v1899 = vpop.permute.xlu0 %1898
      %1900 = vrot.lane.b32.xlu0 %v412, 8
      %v1901 = vpop.permute.xlu0 %1900
      %1902 = vrot.lane.b32.xlu0 %v413, 8
      %v1903 = vpop.permute.xlu0 %1902
      %1904 = vrot.lane.b32.xlu0 %v414, 8
      %v1905 = vpop.permute.xlu0 %1904
      %1906 = vrot.lane.b32.xlu0 %v415, 8
      %v1907 = vpop.permute.xlu0 %1906
      %1908 = vrot.lane.b32.xlu0 %v416, 8
      %v1909 = vpop.permute.xlu0 %1908
      %1910 = vrot.lane.b32.xlu0 %v417, 8
      %v1911 = vpop.permute.xlu0 %1910
      %1912 = vrot.lane.b32.xlu0 %v418, 8
      %v1913 = vpop.permute.xlu0 %1912
      %1946 = vrot.lane.b32.xlu0 %v419, 12
      %v1947 = vpop.permute.xlu0 %1946
      %1948 = vrot.lane.b32.xlu0 %v420, 12
      %v1949 = vpop.permute.xlu0 %1948
      %1950 = vrot.lane.b32.xlu0 %v421, 12
      %v1951 = vpop.permute.xlu0 %1950
      %1952 = vrot.lane.b32.xlu0 %v422, 12
      %v1953 = vpop.permute.xlu0 %1952
      %1954 = vrot.lane.b32.xlu0 %v423, 12
      %v1955 = vpop.permute.xlu0 %1954
      %1956 = vrot.lane.b32.xlu0 %v424, 12
      %v1957 = vpop.permute.xlu0 %1956
      %1958 = vrot.lane.b32.xlu0 %v425, 12
      %v1959 = vpop.permute.xlu0 %1958
      %1960 = vrot.lane.b32.xlu0 %v426, 12
      %v1961 = vpop.permute.xlu0 %1960
      %1962 = vrot.lane.b32.xlu0 %v427, 12
      %v1963 = vpop.permute.xlu0 %1962
      %1964 = vrot.lane.b32.xlu0 %v428, 12
      %v1965 = vpop.permute.xlu0 %1964
      %1966 = vrot.lane.b32.xlu0 %v429, 12
      %v1967 = vpop.permute.xlu0 %1966
      %1968 = vrot.lane.b32.xlu0 %v430, 12
      %v1969 = vpop.permute.xlu0 %1968
      %1970 = vrot.lane.b32.xlu0 %v431, 12
      %v1971 = vpop.permute.xlu0 %1970
      %1972 = vrot.lane.b32.xlu0 %v432, 12
      %v1973 = vpop.permute.xlu0 %1972
      %1974 = vrot.lane.b32.xlu0 %v433, 12
      %v1975 = vpop.permute.xlu0 %1974
      %1976 = vrot.lane.b32.xlu0 %v434, 12
      %v1977 = vpop.permute.xlu0 %1976
      %v1994 = vsel %vm237, %v354, %v1835
      %v1995 = vsel %vm237, %v355, %v1837
      %v1996 = vsel %vm237, %v356, %v1839
      %v1997 = vsel %vm237, %v357, %v1841
      %v1998 = vsel %vm237, %v358, %v1843
      %v1999 = vsel %vm237, %v359, %v1845
      %v2000 = vsel %vm237, %v360, %v1847
      %v2001 = vsel %vm237, %v361, %v1849
      %v2002 = vsel %vm237, %v362, %v1851
      %v2003 = vsel %vm237, %v363, %v1853
      %v2004 = vsel %vm237, %v364, %v1855
      %v2005 = vsel %vm237, %v365, %v1857
      %v2006 = vsel %vm237, %v366, %v1859
      %v2007 = vsel %vm237, %v367, %v1861
      %v2008 = vsel %vm237, %v368, %v1863
      %v2009 = vsel %vm237, %v369, %v1865
      %v2010 = vsel %vm644, %v1994, %v1883
      %v2011 = vsel %vm644, %v1995, %v1885
      %v2012 = vsel %vm644, %v1996, %v1887
      %v2013 = vsel %vm644, %v1997, %v1889
      %v2014 = vsel %vm644, %v1998, %v1891
      %v2015 = vsel %vm644, %v1999, %v1893
      %v2016 = vsel %vm644, %v2000, %v1895
      %v2017 = vsel %vm644, %v2001, %v1897
      %v2018 = vsel %vm644, %v2002, %v1899
      %v2019 = vsel %vm644, %v2003, %v1901
      %v2020 = vsel %vm644, %v2004, %v1903
      %v2021 = vsel %vm644, %v2005, %v1905
      %v2022 = vsel %vm644, %v2006, %v1907
      %v2023 = vsel %vm644, %v2007, %v1909
      %v2024 = vsel %vm644, %v2008, %v1911
      %v2025 = vsel %vm644, %v2009, %v1913
      %v2026 = vsel %vm661, %v2010, %v1947
      %v2027 = vsel %vm661, %v2011, %v1949
      %v2028 = vsel %vm661, %v2012, %v1951
      %v2029 = vsel %vm661, %v2013, %v1953
      %v2030 = vsel %vm661, %v2014, %v1955
      %v2031 = vsel %vm661, %v2015, %v1957
      %v2032 = vsel %vm661, %v2016, %v1959
      %v2033 = vsel %vm661, %v2017, %v1961
      %v2034 = vsel %vm661, %v2018, %v1963
      %v2035 = vsel %vm661, %v2019, %v1965
      %v2036 = vsel %vm661, %v2020, %v1967
      %v2037 = vsel %vm661, %v2021, %v1969
      %v2038 = vsel %vm661, %v2022, %v1971
      %v2039 = vsel %vm661, %v2023, %v1973
      %v2040 = vsel %vm661, %v2024, %v1975
      %v2041 = vsel %vm661, %v2025, %v1977
      %s2042 = scalar_lea.vmem %s1, 48
      %v2043 = vld [vmem:[%s2042] sm:$0xff]
      %v2044 = vld [vmem:[%s2042 + $0x8] sm:$0xff]
      %v2046 = vsel %vm686, %v2026, 0
      %v2049 = vsel %vm686, %v2027, 0
      %v2052 = vsel %vm686, %v2028, 0
      %v2055 = vsel %vm686, %v2029, 0
      %v2058 = vsel %vm686, %v2030, 0
      %v2061 = vsel %vm686, %v2031, 0
      %v2064 = vsel %vm686, %v2032, 0
      %v2067 = vsel %vm686, %v2033, 0
      %v2070 = vsel %vm686, %v2034, 0
      %v2073 = vsel %vm686, %v2035, 0
      %v2076 = vsel %vm686, %v2036, 0
      %v2079 = vsel %vm686, %v2037, 0
      %v2082 = vsel %vm686, %v2038, 0
      %v2085 = vsel %vm686, %v2039, 0
      %v2088 = vsel %vm686, %v2040, 0
      %v2091 = vsel %vm686, %v2041, 0
      %2093 = vmatprep.subr.mxu0 0.0
      %2094 = vmatpush1.msra.mxu0 0.0
      %2095 = vmatprep.subr.mxu0 0.0
      %2096 = vmatpush1.msra.mxu0 0.0
      %2097 = vmatprep.subr.mxu0 0.0
      %2098 = vmatpush1.msra.mxu0 0.0
      %2099 = vmatprep.subr.mxu0 0.0
      %2100 = vmatpush1.msra.mxu0 0.0
      %2101 = vmatprep.subr.mxu0 0.0
      %2102 = vmatpush1.msra.mxu0 0.0
      %2103 = vmatprep.subr.mxu0 0.0
      %2104 = vmatpush1.msra.mxu0 0.0
      %2105 = vmatprep.subr.mxu0 0.0
      %2106 = vmatpush1.msra.mxu0 0.0
      %2107 = vmatprep.subr.mxu0 0.0
      %2108 = vmatpush1.msra.mxu0 0.0
      %2109 = vmatprep.subr.mxu0 0.0
      %2110 = vmatpush1.msra.mxu0 0.0
      %2111 = vmatprep.subr.mxu0 0.0
      %2112 = vmatpush1.msra.mxu0 0.0
      %2113 = vmatprep.subr.mxu0 0.0
      %2114 = vmatpush1.msra.mxu0 0.0
      %2115 = vmatprep.subr.mxu0 0.0
      %2116 = vmatpush1.msra.mxu0 0.0
      %2117 = vmatprep.subr.mxu0 0.0
      %2118 = vmatpush1.msra.mxu0 0.0
      %2119 = vmatprep.subr.mxu0 0.0
      %2120 = vmatpush1.msra.mxu0 0.0
      %2121 = vmatprep.subr.mxu0 0.0
      %2122 = vmatpush1.msra.mxu0 %v2044
      %2123 = vmatprep.subr.mxu0 0.0
      %2124 = vmatpush1.msra.mxu0 %v2043
      %2125 = vmatprep.subr.mxu0 0.0
      %2126 = vmatpush2.msra.mxu0 0.0
      %2127 = vmatprep.subr.mxu0 0.0
      %2128 = vmatpush2.msra.mxu0 0.0
      %2129 = vmatprep.subr.mxu0 0.0
      %2130 = vmatpush2.msra.mxu0 0.0
      %2131 = vmatprep.subr.mxu0 0.0
      %2132 = vmatpush2.msra.mxu0 0.0
      %2133 = vmatprep.subr.mxu0 0.0
      %2134 = vmatpush2.msra.mxu0 0.0
      %2135 = vmatprep.subr.mxu0 0.0
      %2136 = vmatpush2.msra.mxu0 0.0
      %2137 = vmatprep.subr.mxu0 0.0
      %2138 = vmatpush2.msra.mxu0 0.0
      %2139 = vmatprep.subr.mxu0 0.0
      %2140 = vmatpush2.msra.mxu0 0.0
      %2141 = vmatprep.subr.mxu0 0.0
      %2142 = vmatpush2.msra.mxu0 0.0
      %2143 = vmatprep.subr.mxu0 0.0
      %2144 = vmatpush2.msra.mxu0 0.0
      %2145 = vmatprep.subr.mxu0 0.0
      %2146 = vmatpush2.msra.mxu0 0.0
      %2147 = vmatprep.subr.mxu0 0.0
      %2148 = vmatpush2.msra.mxu0 0.0
      %2149 = vmatprep.subr.mxu0 0.0
      %2150 = vmatpush2.msra.mxu0 0.0
      %2151 = vmatprep.subr.mxu0 0.0
      %2152 = vmatpush2.msra.mxu0 0.0
      %2153 = vmatprep.subr.mxu0 0.0
      %2154 = vmatpush2.msra.mxu0 0.0
      %2155 = vmatprep.subr.mxu0 0.0
      %2156 = vmatpush2.msra.mxu0 0.0
      %2157 = vmatprep.mubr.f32.mxu0 0.0
      %2158 = vmatmul.mubr.f32.gmra.mxu0 %v2046
      %v2159 = vpop.f32.mrf.mxu0
      %v2160 = vadd.f32 %v684, %v2159
      %v2161 = vpop.f32.mrf.mxu0
      %2162 = vmatprep.mubr.f32.mxu0 0.0
      %2163 = vmatmul.mubr.f32.gmra.mxu0 %v2049
      %v2164 = vpop.f32.mrf.mxu0
      %v2165 = vadd.f32 %v684, %v2164
      %v2166 = vpop.f32.mrf.mxu0
      %2167 = vmatprep.mubr.f32.mxu0 0.0
      %2168 = vmatmul.mubr.f32.gmra.mxu0 %v2052
      %v2169 = vpop.f32.mrf.mxu0
      %v2170 = vadd.f32 %v684, %v2169
      %v2171 = vpop.f32.mrf.mxu0
      %2172 = vmatprep.mubr.f32.mxu0 0.0
      %2173 = vmatmul.mubr.f32.gmra.mxu0 %v2055
      %v2174 = vpop.f32.mrf.mxu0
      %v2175 = vadd.f32 %v684, %v2174
      %v2176 = vpop.f32.mrf.mxu0
      %2177 = vmatprep.mubr.f32.mxu0 0.0
      %2178 = vmatmul.mubr.f32.gmra.mxu0 %v2058
      %v2179 = vpop.f32.mrf.mxu0
      %v2180 = vadd.f32 %v684, %v2179
      %v2181 = vpop.f32.mrf.mxu0
      %2182 = vmatprep.mubr.f32.mxu0 0.0
      %2183 = vmatmul.mubr.f32.gmra.mxu0 %v2061
      %v2184 = vpop.f32.mrf.mxu0
      %v2185 = vadd.f32 %v684, %v2184
      %v2186 = vpop.f32.mrf.mxu0
      %2187 = vmatprep.mubr.f32.mxu0 0.0
      %2188 = vmatmul.mubr.f32.gmra.mxu0 %v2064
      %v2189 = vpop.f32.mrf.mxu0
      %v2190 = vadd.f32 %v684, %v2189
      %v2191 = vpop.f32.mrf.mxu0
      %2192 = vmatprep.mubr.f32.mxu0 0.0
      %2193 = vmatmul.mubr.f32.gmra.mxu0 %v2067
      %v2194 = vpop.f32.mrf.mxu0
      %v2195 = vadd.f32 %v684, %v2194
      %v2196 = vpop.f32.mrf.mxu0
      %2197 = vmatprep.mubr.f32.mxu0 0.0
      %2198 = vmatmul.mubr.f32.gmra.mxu0 %v2070
      %v2199 = vpop.f32.mrf.mxu0
      %v2200 = vadd.f32 %v684, %v2199
      %v2201 = vpop.f32.mrf.mxu0
      %2202 = vmatprep.mubr.f32.mxu0 0.0
      %2203 = vmatmul.mubr.f32.gmra.mxu0 %v2073
      %v2204 = vpop.f32.mrf.mxu0
      %v2205 = vadd.f32 %v684, %v2204
      %v2206 = vpop.f32.mrf.mxu0
      %2207 = vmatprep.mubr.f32.mxu0 0.0
      %2208 = vmatmul.mubr.f32.gmra.mxu0 %v2076
      %v2209 = vpop.f32.mrf.mxu0
      %v2210 = vadd.f32 %v684, %v2209
      %v2211 = vpop.f32.mrf.mxu0
      %2212 = vmatprep.mubr.f32.mxu0 0.0
      %2213 = vmatmul.mubr.f32.gmra.mxu0 %v2079
      %v2214 = vpop.f32.mrf.mxu0
      %v2215 = vadd.f32 %v684, %v2214
      %v2216 = vpop.f32.mrf.mxu0
      %2217 = vmatprep.mubr.f32.mxu0 0.0
      %2218 = vmatmul.mubr.f32.gmra.mxu0 %v2082
      %v2219 = vpop.f32.mrf.mxu0
      %v2220 = vadd.f32 %v684, %v2219
      %v2221 = vpop.f32.mrf.mxu0
      %2222 = vmatprep.mubr.f32.mxu0 0.0
      %2223 = vmatmul.mubr.f32.gmra.mxu0 %v2085
      %v2224 = vpop.f32.mrf.mxu0
      %v2225 = vadd.f32 %v684, %v2224
      %v2226 = vpop.f32.mrf.mxu0
      %2227 = vmatprep.mubr.f32.mxu0 0.0
      %2228 = vmatmul.mubr.f32.gmra.mxu0 %v2088
      %v2229 = vpop.f32.mrf.mxu0
      %v2230 = vadd.f32 %v684, %v2229
      %v2231 = vpop.f32.mrf.mxu0
      %2232 = vmatprep.mubr.f32.mxu0 0.0
      %2233 = vmatmul.mubr.f32.gmra.mxu0 %v2091
      %v2234 = vpop.f32.mrf.mxu0
      %v2235 = vadd.f32 %v684, %v2234
      %v2236 = vpop.f32.mrf.mxu0
      %2237 = vdwg.mxu0
      %2254 = vrot.lane.b32.xlu0 %v2160, 4
      %v2255 = vpop.permute.xlu0 %2254
      %2256 = vrot.lane.b32.xlu0 %v2165, 4
      %v2257 = vpop.permute.xlu0 %2256
      %2258 = vrot.lane.b32.xlu0 %v2170, 4
      %v2259 = vpop.permute.xlu0 %2258
      %2260 = vrot.lane.b32.xlu0 %v2175, 4
      %v2261 = vpop.permute.xlu0 %2260
      %2262 = vrot.lane.b32.xlu0 %v2180, 4
      %v2263 = vpop.permute.xlu0 %2262
      %2264 = vrot.lane.b32.xlu0 %v2185, 4
      %v2265 = vpop.permute.xlu0 %2264
      %2266 = vrot.lane.b32.xlu0 %v2190, 4
      %v2267 = vpop.permute.xlu0 %2266
      %2268 = vrot.lane.b32.xlu0 %v2195, 4
      %v2269 = vpop.permute.xlu0 %2268
      %2270 = vrot.lane.b32.xlu0 %v2200, 4
      %v2271 = vpop.permute.xlu0 %2270
      %2272 = vrot.lane.b32.xlu0 %v2205, 4
      %v2273 = vpop.permute.xlu0 %2272
      %2274 = vrot.lane.b32.xlu0 %v2210, 4
      %v2275 = vpop.permute.xlu0 %2274
      %2276 = vrot.lane.b32.xlu0 %v2215, 4
      %v2277 = vpop.permute.xlu0 %2276
      %2278 = vrot.lane.b32.xlu0 %v2220, 4
      %v2279 = vpop.permute.xlu0 %2278
      %2280 = vrot.lane.b32.xlu0 %v2225, 4
      %v2281 = vpop.permute.xlu0 %2280
      %2282 = vrot.lane.b32.xlu0 %v2230, 4
      %v2283 = vpop.permute.xlu0 %2282
      %2284 = vrot.lane.b32.xlu0 %v2235, 4
      %v2285 = vpop.permute.xlu0 %2284
      %2302 = vst.msk [vmem:[%s1817] sm:$0xff] %vm1380, %v2255
      %2303 = vst.msk [vmem:[%s1817 + $0x8] sm:$0xff] %vm1380, %v2257
      %2304 = vst.msk [vmem:[%s1817 + $0x20] sm:$0xff] %vm1380, %v2259
      %2305 = vst.msk [vmem:[%s1817 + $0x28] sm:$0xff] %vm1380, %v2261
      %2306 = vst.msk [vmem:[%s1817 + $0x40] sm:$0xff] %vm1380, %v2263
      %2307 = vst.msk [vmem:[%s1817 + $0x48] sm:$0xff] %vm1380, %v2265
      %2308 = vst.msk [vmem:[%s1817 + $0x60] sm:$0xff] %vm1380, %v2267
      %2309 = vst.msk [vmem:[%s1817 + $0x68] sm:$0xff] %vm1380, %v2269
      %2310 = vst.msk [vmem:[%s1817 + $0x80] sm:$0xff] %vm1380, %v2271
      %2311 = vst.msk [vmem:[%s1817 + $0x88] sm:$0xff] %vm1380, %v2273
      %2312 = vst.msk [vmem:[%s1817 + $0xa0] sm:$0xff] %vm1380, %v2275
      %2313 = vst.msk [vmem:[%s1817 + $0xa8] sm:$0xff] %vm1380, %v2277
      %2314 = vst.msk [vmem:[%s1817 + $0xc0] sm:$0xff] %vm1380, %v2279
      %2315 = vst.msk [vmem:[%s1817 + $0xc8] sm:$0xff] %vm1380, %v2281
      %2316 = vst.msk [vmem:[%s1817 + $0xe0] sm:$0xff] %vm1380, %v2283
      %2317 = vst.msk [vmem:[%s1817 + $0xe8] sm:$0xff] %vm1380, %v2285
      %s2318 = smul.u32 8, %s19
      %p2319 = scmp.lt.s32.totalorder %s18, 1
      %s2320 = scalar_select %p2319, %s18, 1
      %p2321 = scmp.lt.s32.totalorder %s2318, 15
      %s2322 = scalar_select %p2321, %s2318, 15
      %s2323 = smul.addr %s2322, 4
      %s2324 = smul.addr %s2320, 64
      %s2325 = sadd.s32 %s2323, %s2324
      %s2326 = smul.addr %s2325, 8
      %s2327 = scalar_lea.vmem %s3, %s2326
      // Predicated region
      $region49: #{tpu_custom_call.1} parent=31 // pred_check
        %p2328 = pneg %p114
      $region50: #{tpu_custom_call.1} parent=31 // pred_check_branch
        %2330 = sbr.rel (%p2328) target = $region52
      $region51: #{tpu_custom_call.1} parent=31 // pred_region
        %s2331 = smul.u32 8, %s19
      $region52: #{tpu_custom_call.1} parent=31 // pred_fallthru
        _
    $region32: #{tpu_custom_call.1} parent=5 // pred_fallthru
      _
    %p2332 = scmp.le.s32.totalorder 2, %s9
    // Predicated region
    $region53: #{tpu_custom_call.1} parent=5 // pred_check
      %p2333 = pneg %p2332
    $region54: #{tpu_custom_call.1} parent=5 // pred_check_branch
      %2335 = sbr.rel (%p2333) target = $region56
    $region55: #{tpu_custom_call.1} parent=5 // pred_region
      %s2336 = ssub.s32 %s9, 2
      // Predicated region
      $region57: #{tpu_custom_call.1} parent=55 // pred_check
        %p2337 = pneg %p120
      $region58: #{tpu_custom_call.1} parent=55 // pred_check_branch
        %2339 = sbr.rel (%p2337) target = $region60
      $region59: #{tpu_custom_call.1} parent=55 // pred_region
        %s2340 = smul.u32 8, %s21
        %p2341 = scmp.lt.s32.totalorder %s20, 1
        %s2342 = scalar_select %p2341, %s20, 1
        %p2343 = scmp.lt.s32.totalorder %s2340, 15
        %s2344 = scalar_select %p2343, %s2340, 15
        %s2345 = smul.addr %s2344, 4
        %s2346 = smul.addr %s2342, 64
        %s2347 = sadd.s32 %s2345, %s2346
        %s2348 = smul.addr %s2347, 8
        %s2349 = scalar_lea.vmem %s3, %s2348
      $region60: #{tpu_custom_call.1} parent=55 // pred_fallthru
        _
    $region56: #{tpu_custom_call.1} parent=5 // pred_fallthru
      _
  $region6: #{tpu_custom_call.1} parent=0 // loop_footer
    %s13 = sadd.s32 1, %s9
  $region7: #{tpu_custom_call.1} parent=0 // loop_footer_branch
    %8 = sbr.rel target = $region3
  $region8: #{tpu_custom_call.1} parent=0 // loop_exit
    _

</llo_original>
